<compile_context>
chip_gen: v7x
topology: tpu7x:2x2x1
jax: 0.10.0
libtpu: 0.0.40
codegen_flags: <defaults>
</compile_context>

<pallas_src>
import jax
import jax.numpy as jnp
from jax import lax
from jax.experimental import pallas as pl
from jax.experimental.pallas import tpu as pltpu


HIDDEN = 256          # approximator_hidden_sizes={'mlp': (256, 256)}
_TILE_ALIGN = 128     # batch tile aligned to lane width so the lane-dense
                      # (1, tb) output block is always a legal block shape.


def _round_up(x, m):
    return ((x + m - 1) // m) * m


def _vcritic_kernel(x_ref, w1t_ref, b1c_ref, w2t_ref, b2c_ref, w3c_ref, b3_ref,
                    o_ref):
    # Transposed-activation layout: activations are (features, batch) so the
    # batch dimension lives on lanes and the final store is lane-dense.

    # Layer 1: h1 = relu(W1^T x^T + b1).  Contract the feature axis of BOTH
    # operands (like q @ k^T) so the streamed state tile needs no transpose.
    xb = x_ref[...].astype(jnp.bfloat16)                        # (tb, S)
    h1 = lax.dot_general(
        w1t_ref[...], xb,
        dimension_numbers=(((1,), (1,)), ((), ())),
        preferred_element_type=jnp.float32)                     # (H, tb)
    h1 = jnp.maximum(h1 + b1c_ref[...], 0.0)                    # ReLU, f32 VPU

    # Layer 2: h2 = relu(W2^T h1 + b2) -- bf16 MXU matmul, f32 accumulate.
    h2 = jnp.dot(w2t_ref[...], h1.astype(jnp.bfloat16),
                 preferred_element_type=jnp.float32)            # (H, tb)
    h2 = jnp.maximum(h2 + b2c_ref[...], 0.0)

    # Layer 3 (H -> 1): VPU broadcast multiply + sublane reduce (XLU) lands
    # directly in the lane-dense (1, tb) output row.  out_activation=Identity.
    out = jnp.sum(h2 * w3c_ref[...], axis=0, keepdims=True) + b3_ref[...]
    o_ref[...] = out.astype(o_ref.dtype)


def vcritic_forward(state, params, *, batch_tile=2048, min_grid_steps=2):
    """state: (B, state_dim) f32.  Returns (B, 1) f32 = V(s).

    batch_tile: upper bound on rows per grid step.  2048 amortizes the
      ~0.35 us per-step overhead; the resulting ~8 MiB of f32 intermediates
      fit every generation's scoped VMEM (v5e default raised via
      vmem_limit_bytes below).
    min_grid_steps: keep >= this many steps when B is big enough so the
      "parallel" batch axis can shard across both v7x TensorCores (costs one
      extra ~0.35 us step on single-TC v5e/v6e).
    """
    w1, b1, w2, b2, w3, b3 = params
    B, state_dim = state.shape
    hidden = w1.shape[1]
    out_dim = w3.shape[1]
    assert out_dim == 1, "V(s) critic emits a scalar value per state"

    # Weight prep (cheap; fuses into surrounding jit): (in,out) -> (out,in) so
    # the kernel computes W^T x^T with batch on lanes.  Big matmul weights in
    # bf16; biases and the tiny output weight stay f32.
    w1t = w1.T.astype(jnp.bfloat16)                  # (H, S)
    w2t = w2.T.astype(jnp.bfloat16)                  # (H, H)
    b1c = b1.reshape(hidden, 1).astype(jnp.float32)  # (H, 1)
    b2c = b2.reshape(hidden, 1).astype(jnp.float32)  # (H, 1)
    w3c = w3.reshape(hidden, 1).astype(jnp.float32)  # (H, 1)
    b3s = b3.reshape(1, 1).astype(jnp.float32)       # (1, 1)

    # Batch tiling: tile derived from B to minimize padding waste, aligned to
    # the lane width, capped at batch_tile, and split into >= min_grid_steps
    # steps when B is large enough (v7x dual-TC utilization).
    n_tiles = pl.cdiv(B, batch_tile)
    if B >= 2 * _TILE_ALIGN:
        n_tiles = max(n_tiles, min_grid_steps)
    tb = _round_up(pl.cdiv(B, n_tiles), _TILE_ALIGN)
    n_tiles = pl.cdiv(B, tb)
    b_pad = n_tiles * tb

    x = state
    if b_pad != B:
        x = jnp.pad(x, ((0, b_pad - B), (0, 0)))

    def const(arr):
        # Same block every grid step -> VMEM-resident; single-buffered since
        # it is never re-fetched (double-buffering it would be pure VMEM waste).
        zeros = (0,) * arr.ndim
        return pl.BlockSpec(arr.shape, lambda i: zeros,
                            pipeline_mode=pl.Buffered(1))

    flops = 2 * b_pad * (state_dim * hidden + hidden * hidden + hidden)
    bytes_accessed = (
        b_pad * state_dim * 4                        # streamed state (f32)
        + w1t.size * 2 + w2t.size * 2                # bf16 weights
        + (b1c.size + b2c.size + w3c.size + b3s.size) * 4
        + b_pad * 4                                  # lane-dense output row
    )

    out = pl.pallas_call(
        _vcritic_kernel,
        out_shape=jax.ShapeDtypeStruct((1, b_pad), jnp.float32),
        grid=(n_tiles,),
        in_specs=[
            pl.BlockSpec((tb, state_dim), lambda i: (i, 0)),   # streamed tile
            const(w1t), const(b1c),
            const(w2t), const(b2c),
            const(w3c), const(b3s),
        ],
        out_specs=pl.BlockSpec((1, tb), lambda i: (0, i)),     # lane-dense
        compiler_params=pltpu.CompilerParams(
            dimension_semantics=("parallel",),
            vmem_limit_bytes=32 * 1024 * 1024),
        cost_estimate=pl.CostEstimate(
            flops=flops, transcendentals=0, bytes_accessed=bytes_accessed),
    )(x, w1t, b1c, w2t, b2c, w3c, b3s)

    return jnp.reshape(out[0, :B], (B, 1))


def init_params(key, state_dim, out_dim, hidden=HIDDEN):
    """Deterministic init mimicking nn.Linear default (uniform +/- 1/sqrt(fan_in))."""
    ks = jax.random.split(key, 6)

    def lin(kw, kb, fan_in, fan_out):
        bound = 1.0 / jnp.sqrt(float(fan_in))
        w = jax.random.uniform(kw, (fan_in, fan_out), jnp.float32, -bound, bound)
        b = jax.random.uniform(kb, (1, fan_out), jnp.float32, -bound, bound)
        return w, b

    w1, b1 = lin(ks[0], ks[1], state_dim, hidden)
    w2, b2 = lin(ks[2], ks[3], hidden, hidden)
    w3, b3 = lin(ks[4], ks[5], hidden, out_dim)
    return (w1, b1, w2, b2, w3, b3)


def vcritic_reference(state, params, *, mimic_bf16):
    """Pure-JAX reference.  mimic_bf16=True applies the same bf16 cast points
    as the kernel so the comparison isolates kernel correctness."""
    w1, b1, w2, b2, w3, b3 = params
    if mimic_bf16:
        f = lambda a: a.astype(jnp.bfloat16).astype(jnp.float32)
    else:
        f = lambda a: a
    h1 = jnp.maximum(f(state) @ f(w1) + b1, 0.0)
    h2 = jnp.maximum(f(h1) @ f(w2) + b2, 0.0)
    return h2 @ w3 + b3


if __name__ == "__main__":
    key = jax.random.PRNGKey(0)
    k_state, k_params = jax.random.split(key)

    B, state_dim, out_dim = 300, 16, 1   # V(s) critic -> scalar value per state
    state = jax.random.normal(k_state, (B, state_dim), dtype=jnp.float32)
    params = init_params(k_params, state_dim, out_dim)

    # Small batch_tile to exercise a multi-step pipelined grid (3 steps of 128
    # with a padded final tile); production default is batch_tile=2048.
    out_tiled = vcritic_forward(state, params, batch_tile=128)
    # Default config: min_grid_steps=2 splits B=300 into 2 steps of 256.
    out_default = vcritic_forward(state, params)
    out_tiled, out_default = jax.block_until_ready((out_tiled, out_default))

    ref_cast = vcritic_reference(state, params, mimic_bf16=True)
    ref_f32 = vcritic_reference(state, params, mimic_bf16=False)

    for out in (out_tiled, out_default):
        assert out.shape == (B, out_dim)
        assert jnp.allclose(out, ref_cast, atol=2e-3, rtol=2e-3), \
            "mismatch vs bf16-cast reference"
        assert jnp.allclose(out, ref_f32, atol=5e-2, rtol=5e-2), \
            "drift vs f32 reference too large"

    # TODO(synk): configure_optimizer (Adam) / configure_criterion (SmoothL1Loss)
    # are training-side utilities, not part of the forward pass, and are not
    # implemented here.
    print("KERNEL_OK")
</pallas_src>

<mosaic_0001>
module attributes {stable_mosaic.version = 11 : i64} {
  func.func @_vcritic_kernel(%arg0: i32, %arg1: memref<128x16xf32, #tpu.memory_space<vmem>>, %arg2: memref<256x16xbf16, #tpu.memory_space<vmem>>, %arg3: memref<256x1xf32, #tpu.memory_space<vmem>>, %arg4: memref<256x256xbf16, #tpu.memory_space<vmem>>, %arg5: memref<256x1xf32, #tpu.memory_space<vmem>>, %arg6: memref<256x1xf32, #tpu.memory_space<vmem>>, %arg7: memref<1x1xf32, #tpu.memory_space<vmem>>, %arg8: memref<1x128xf32, #tpu.memory_space<vmem>>) attributes {dimension_semantics = [#tpu.dimension_semantics<parallel>], iteration_bounds = array<i64: 3>, scalar_prefetch = 0 : i64, scratch_operands = 0 : i64, tpu.core_type = #tpu.core_type<tc>, window_params = [{transform_indices = @transform_0, window_bounds = array<i64: 128, 16>}, {pipeline_mode = #tpu.pipeline_mode<synchronous>, transform_indices = @transform_1, window_bounds = array<i64: 256, 16>}, {pipeline_mode = #tpu.pipeline_mode<synchronous>, transform_indices = @transform_2, window_bounds = array<i64: 256, 1>}, {pipeline_mode = #tpu.pipeline_mode<synchronous>, transform_indices = @transform_3, window_bounds = array<i64: 256, 256>}, {pipeline_mode = #tpu.pipeline_mode<synchronous>, transform_indices = @transform_4, window_bounds = array<i64: 256, 1>}, {pipeline_mode = #tpu.pipeline_mode<synchronous>, transform_indices = @transform_5, window_bounds = array<i64: 256, 1>}, {pipeline_mode = #tpu.pipeline_mode<synchronous>, transform_indices = @transform_6, window_bounds = array<i64: 1, 1>}, {transform_indices = @transform_7, window_bounds = array<i64: 1, 128>}]} {
    %c0 = arith.constant 0 : index
    %c0_0 = arith.constant 0 : index
    %0 = vector.load %arg1[%c0, %c0_0] : memref<128x16xf32, #tpu.memory_space<vmem>>, vector<128x16xf32>
    %1 = arith.truncf %0 : vector<128x16xf32> to vector<128x16xbf16>
    %c0_1 = arith.constant 0 : index
    %c0_2 = arith.constant 0 : index
    %2 = vector.load %arg2[%c0_1, %c0_2] : memref<256x16xbf16, #tpu.memory_space<vmem>>, vector<256x16xbf16>
    %cst = arith.constant dense<0.000000e+00> : vector<256x128xf32>
    %3 = tpu.matmul %2, %1, %cst {dimension_numbers = #tpu.dot_dimension_numbers<[1], [1], [0], [0], [0, 0, 1, 0], [], []>} : vector<256x16xbf16>, vector<128x16xbf16>, vector<256x128xf32> -> vector<256x128xf32>
    %c0_3 = arith.constant 0 : index
    %c0_4 = arith.constant 0 : index
    %4 = vector.load %arg3[%c0_3, %c0_4] : memref<256x1xf32, #tpu.memory_space<vmem>>, vector<256x1xf32>
    %5 = vector.broadcast %4 : vector<256x1xf32> to vector<256x128xf32>
    %6 = arith.addf %3, %5 : vector<256x128xf32>
    %cst_5 = arith.constant 0.000000e+00 : f32
    %7 = vector.broadcast %cst_5 : f32 to vector<256x128xf32>
    %8 = arith.maximumf %6, %7 : vector<256x128xf32>
    %c0_6 = arith.constant 0 : index
    %c0_7 = arith.constant 0 : index
    %9 = vector.load %arg4[%c0_6, %c0_7] : memref<256x256xbf16, #tpu.memory_space<vmem>>, vector<256x256xbf16>
    %10 = arith.truncf %8 : vector<256x128xf32> to vector<256x128xbf16>
    %cst_8 = arith.constant dense<0.000000e+00> : vector<256x128xf32>
    %11 = tpu.matmul %9, %10, %cst_8 {dimension_numbers = #tpu.dot_dimension_numbers<[1], [0], [0], [1], [0, 0, 1, 1], [], []>} : vector<256x256xbf16>, vector<256x128xbf16>, vector<256x128xf32> -> vector<256x128xf32>
    %c0_9 = arith.constant 0 : index
    %c0_10 = arith.constant 0 : index
    %12 = vector.load %arg5[%c0_9, %c0_10] : memref<256x1xf32, #tpu.memory_space<vmem>>, vector<256x1xf32>
    %13 = vector.broadcast %12 : vector<256x1xf32> to vector<256x128xf32>
    %14 = arith.addf %11, %13 : vector<256x128xf32>
    %cst_11 = arith.constant 0.000000e+00 : f32
    %15 = vector.broadcast %cst_11 : f32 to vector<256x128xf32>
    %16 = arith.maximumf %14, %15 : vector<256x128xf32>
    %c0_12 = arith.constant 0 : index
    %c0_13 = arith.constant 0 : index
    %17 = vector.load %arg6[%c0_12, %c0_13] : memref<256x1xf32, #tpu.memory_space<vmem>>, vector<256x1xf32>
    %18 = vector.broadcast %17 : vector<256x1xf32> to vector<256x128xf32>
    %19 = arith.mulf %16, %18 : vector<256x128xf32>
    %cst_14 = arith.constant dense<0.000000e+00> : vector<128xf32>
    %20 = vector.multi_reduction <add>, %19, %cst_14 [0] : vector<256x128xf32> to vector<128xf32>
    %21 = vector.shape_cast %20 : vector<128xf32> to vector<1x128xf32>
    %c0_15 = arith.constant 0 : index
    %c0_16 = arith.constant 0 : index
    %22 = vector.load %arg7[%c0_15, %c0_16] : memref<1x1xf32, #tpu.memory_space<vmem>>, vector<1x1xf32>
    %23 = vector.broadcast %22 : vector<1x1xf32> to vector<1x128xf32>
    %24 = arith.addf %21, %23 : vector<1x128xf32>
    %c0_17 = arith.constant 0 : index
    %c0_18 = arith.constant 0 : index
    %25 = vector.load %arg8[%c0_17, %c0_18] : memref<1x128xf32, #tpu.memory_space<vmem>>, vector<1x128xf32>
    tpu.vector_store %arg8[%c0_17, %c0_18], %24 {strides = array<i32>} : memref<1x128xf32, #tpu.memory_space<vmem>>, vector<1x128xf32>,
    return
  }
  func.func @transform_0(%arg0: i32) -> (i32, i32) {
    %c0_i32 = arith.constant 0 : i32
    %c0_i32_0 = arith.constant 0 : i32
    return %arg0, %c0_i32 : i32, i32
  }
  func.func @transform_1(%arg0: i32) -> (i32, i32) {
    %c0_i32 = arith.constant 0 : i32
    %c0_i32_0 = arith.constant 0 : i32
    %c0_i32_1 = arith.constant 0 : i32
    return %c0_i32, %c0_i32_0 : i32, i32
  }
  func.func @transform_2(%arg0: i32) -> (i32, i32) {
    %c0_i32 = arith.constant 0 : i32
    %c0_i32_0 = arith.constant 0 : i32
    %c0_i32_1 = arith.constant 0 : i32
    return %c0_i32, %c0_i32_0 : i32, i32
  }
  func.func @transform_3(%arg0: i32) -> (i32, i32) {
    %c0_i32 = arith.constant 0 : i32
    %c0_i32_0 = arith.constant 0 : i32
    %c0_i32_1 = arith.constant 0 : i32
    return %c0_i32, %c0_i32_0 : i32, i32
  }
  func.func @transform_4(%arg0: i32) -> (i32, i32) {
    %c0_i32 = arith.constant 0 : i32
    %c0_i32_0 = arith.constant 0 : i32
    %c0_i32_1 = arith.constant 0 : i32
    return %c0_i32, %c0_i32_0 : i32, i32
  }
  func.func @transform_5(%arg0: i32) -> (i32, i32) {
    %c0_i32 = arith.constant 0 : i32
    %c0_i32_0 = arith.constant 0 : i32
    %c0_i32_1 = arith.constant 0 : i32
    return %c0_i32, %c0_i32_0 : i32, i32
  }
  func.func @transform_6(%arg0: i32) -> (i32, i32) {
    %c0_i32 = arith.constant 0 : i32
    %c0_i32_0 = arith.constant 0 : i32
    %c0_i32_1 = arith.constant 0 : i32
    return %c0_i32, %c0_i32_0 : i32, i32
  }
  func.func @transform_7(%arg0: i32) -> (i32, i32) {
    %c0_i32 = arith.constant 0 : i32
    %c0_i32_0 = arith.constant 0 : i32
    return %c0_i32, %arg0 : i32, i32
  }
}

</mosaic_0001>

<llo_original>
// kernel: tpu_custom_call.1
$region0: #{tpu_custom_call.1}
  #allocation0 [shape = 'u32[]', space=smem, size = 0x4, offset = 0x4, fixed_abs, tag = 'smem constant byte address 0x4 - core index']
  #allocation1 [shape = 'u32[144,128]{1,0:T(1,128)}', space=vmem, size = 0x12000, scoped, tag = 'internal scratch']
  #allocation2 [shape = 'f32[1,1]{1,0:T(1,128)S(1)}', space=vmem, size = 0x200, scoped, tag = 'scoped memory for tpu_custom_call.1']
  %s0 = inlined_call_operand.vmem [shape: f32[384,16], index: 0, kind: input, shape index: {}]
  %s1 = inlined_call_operand.vmem [shape: bf16[256,16], index: 1, kind: input, shape index: {}]
  %s2 = inlined_call_operand.vmem [shape: f32[256,1], index: 2, kind: input, shape index: {}]
  %s3 = inlined_call_operand.vmem [shape: bf16[256,256], index: 3, kind: input, shape index: {}]
  %s4 = inlined_call_operand.vmem [shape: f32[256,1], index: 4, kind: input, shape index: {}]
  %s5 = inlined_call_operand.vmem [shape: f32[256,1], index: 5, kind: input, shape index: {}]
  %s6 = inlined_call_operand.<no memory space> [shape: f32[1,1], index: 6, kind: input, shape index: {}]
  %s7 = inlined_call_operand.hbm [shape: f32[1,384], index: 7, kind: output, shape index: {}]
  %s8 = sld [smem:[#allocation0]]
  $region61: #{tpu_custom_call.1} parent=0
    _
  %s10 = ssub.s32 1, %s8
  %s11 = scalar_select 0, %s10, %s8
  %v12 = vstv %s6
  %13 = vst [vmem:[#allocation2] sm:$0x1] %v12
  $region1: #{tpu_custom_call.1} parent=0
    #allocation3 [shape = 'u8[1024]{0}', space=vmem, size = 0x400, scoped, tag = 'output window, operand 0']
    #allocation4 [shape = 's32[2]{0}', space=sflag, size = 0x8, scoped, tag = 'scoped memory for tpu_custom_call.1']
    %14 = vsyncpa [#allocation4], 0
    %s15 = scalar_lea.sflag [#allocation4], 1
    %16 = vsyncpa %s15, 0
    loop: start=0, step=1, limit=5
    $region2: #{tpu_custom_call.1} parent=1 // loop_pre_header
      _
    $region3: #{tpu_custom_call.1} parent=1 // loop_header
      %s18 = sphi 0, %s22
      %p19 = scmp.ge.s32.totalorder %s18, 5
      %s28 = sphi 0, %s30
      %s31 = sphi 0, %s28
      %s32 = sphi 0, %s31
      %s48 = sphi 0, %s32
      %s52 = sphi 0, %s52
      %s54 = sphi 0, %s52
      %s55 = sphi 0, %s54
      %s69 = sphi 0, %s55
      %s73 = sphi 0, %s73
      %s75 = sphi 0, %s73
      %s76 = sphi 0, %s75
      %s90 = sphi 0, %s76
      %s94 = sphi 0, %s94
      %s96 = sphi 0, %s94
      %s97 = sphi 0, %s96
      %s111 = sphi 0, %s97
      %s115 = sphi 0, %s115
      %s117 = sphi 0, %s115
      %s118 = sphi 0, %s117
      %s132 = sphi 0, %s118
      %s136 = sphi 0, %s136
      %s138 = sphi 0, %s136
      %s139 = sphi 0, %s138
      %s153 = sphi 0, %s139
      %s157 = sphi 0, %s157
      %s159 = sphi 0, %s157
      %s160 = sphi 0, %s159
      %s174 = sphi 0, %s160
      %s180 = sphi 0, %s182
      %s183 = sphi 0, %s180
      %s184 = sphi 0, %s183
      %s200 = sphi 0, %s184
    $region4: #{tpu_custom_call.1} parent=1 // loop_header_branch
      %21 = sbr.rel (%p19) target = $region8
    $region5: #{tpu_custom_call.1} parent=1 // loop_body
      %s23 = ssub.s32 %s18, 1
      %s24 = ssub.s32 %s18, 2
      %s25 = sadd.s32 %s18, 1
      %s26 = ssub.s32 %s18, %s25
      %p27 = scmp.eq.s32.totalorder %s26, 0
      %s29 = sadd.s32 %s28, 1
      %s30 = scalar_select %p27, %s28, %s29
      %p33 = pneg %p27
      %p34 = scmp.eq.s32.totalorder %s18, 2
      %p35 = por %p33, %p34
      %p36 = scmp.ne.s32.totalorder %s28, %s31
      %p37 = scmp.eq.s32.totalorder %s18, 0
      %p38 = por %p36, %p37
      %p39 = scmp.ne.s32.totalorder %s28, %s31
      %p40 = scmp.eq.s32.totalorder %s23, 2
      %p41 = por %p39, %p40
      %p42 = scmp.ne.s32.totalorder %s31, %s32
      %p43 = scmp.eq.s32.totalorder %s23, 0
      %p44 = por %p42, %p43
      %p45 = scmp.ne.s32.totalorder %s31, %s32
      %p46 = scmp.eq.s32.totalorder %s24, 2
      %p47 = por %p45, %p46
      %p49 = scmp.ne.s32.totalorder %s32, %s48
      %p50 = scmp.eq.s32.totalorder %s24, 0
      %p51 = por %p49, %p50
      %s53 = sadd.s32 %s52, 1
      %p56 = scmp.eq.s32.totalorder %s18, 2
      %p57 = scmp.ne.s32.totalorder %s52, %s54
      %p58 = scmp.eq.s32.totalorder %s18, 0
      %p59 = por %p57, %p58
      %p60 = scmp.ne.s32.totalorder %s52, %s54
      %p61 = scmp.eq.s32.totalorder %s23, 2
      %p62 = por %p60, %p61
      %p63 = scmp.ne.s32.totalorder %s54, %s55
      %p64 = scmp.eq.s32.totalorder %s23, 0
      %p65 = por %p63, %p64
      %p66 = scmp.ne.s32.totalorder %s54, %s55
      %p67 = scmp.eq.s32.totalorder %s24, 2
      %p68 = por %p66, %p67
      %p70 = scmp.ne.s32.totalorder %s55, %s69
      %p71 = scmp.eq.s32.totalorder %s24, 0
      %p72 = por %p70, %p71
      %s74 = sadd.s32 %s73, 1
      %p77 = scmp.eq.s32.totalorder %s18, 2
      %p78 = scmp.ne.s32.totalorder %s73, %s75
      %p79 = scmp.eq.s32.totalorder %s18, 0
      %p80 = por %p78, %p79
      %p81 = scmp.ne.s32.totalorder %s73, %s75
      %p82 = scmp.eq.s32.totalorder %s23, 2
      %p83 = por %p81, %p82
      %p84 = scmp.ne.s32.totalorder %s75, %s76
      %p85 = scmp.eq.s32.totalorder %s23, 0
      %p86 = por %p84, %p85
      %p87 = scmp.ne.s32.totalorder %s75, %s76
      %p88 = scmp.eq.s32.totalorder %s24, 2
      %p89 = por %p87, %p88
      %p91 = scmp.ne.s32.totalorder %s76, %s90
      %p92 = scmp.eq.s32.totalorder %s24, 0
      %p93 = por %p91, %p92
      %s95 = sadd.s32 %s94, 1
      %p98 = scmp.eq.s32.totalorder %s18, 2
      %p99 = scmp.ne.s32.totalorder %s94, %s96
      %p100 = scmp.eq.s32.totalorder %s18, 0
      %p101 = por %p99, %p100
      %p102 = scmp.ne.s32.totalorder %s94, %s96
      %p103 = scmp.eq.s32.totalorder %s23, 2
      %p104 = por %p102, %p103
      %p105 = scmp.ne.s32.totalorder %s96, %s97
      %p106 = scmp.eq.s32.totalorder %s23, 0
      %p107 = por %p105, %p106
      %p108 = scmp.ne.s32.totalorder %s96, %s97
      %p109 = scmp.eq.s32.totalorder %s24, 2
      %p110 = por %p108, %p109
      %p112 = scmp.ne.s32.totalorder %s97, %s111
      %p113 = scmp.eq.s32.totalorder %s24, 0
      %p114 = por %p112, %p113
      %s116 = sadd.s32 %s115, 1
      %p119 = scmp.eq.s32.totalorder %s18, 2
      %p120 = scmp.ne.s32.totalorder %s115, %s117
      %p121 = scmp.eq.s32.totalorder %s18, 0
      %p122 = por %p120, %p121
      %p123 = scmp.ne.s32.totalorder %s115, %s117
      %p124 = scmp.eq.s32.totalorder %s23, 2
      %p125 = por %p123, %p124
      %p126 = scmp.ne.s32.totalorder %s117, %s118
      %p127 = scmp.eq.s32.totalorder %s23, 0
      %p128 = por %p126, %p127
      %p129 = scmp.ne.s32.totalorder %s117, %s118
      %p130 = scmp.eq.s32.totalorder %s24, 2
      %p131 = por %p129, %p130
      %p133 = scmp.ne.s32.totalorder %s118, %s132
      %p134 = scmp.eq.s32.totalorder %s24, 0
      %p135 = por %p133, %p134
      %s137 = sadd.s32 %s136, 1
      %p140 = scmp.eq.s32.totalorder %s18, 2
      %p141 = scmp.ne.s32.totalorder %s136, %s138
      %p142 = scmp.eq.s32.totalorder %s18, 0
      %p143 = por %p141, %p142
      %p144 = scmp.ne.s32.totalorder %s136, %s138
      %p145 = scmp.eq.s32.totalorder %s23, 2
      %p146 = por %p144, %p145
      %p147 = scmp.ne.s32.totalorder %s138, %s139
      %p148 = scmp.eq.s32.totalorder %s23, 0
      %p149 = por %p147, %p148
      %p150 = scmp.ne.s32.totalorder %s138, %s139
      %p151 = scmp.eq.s32.totalorder %s24, 2
      %p152 = por %p150, %p151
      %p154 = scmp.ne.s32.totalorder %s139, %s153
      %p155 = scmp.eq.s32.totalorder %s24, 0
      %p156 = por %p154, %p155
      %s158 = sadd.s32 %s157, 1
      %p161 = scmp.eq.s32.totalorder %s18, 2
      %p162 = scmp.ne.s32.totalorder %s157, %s159
      %p163 = scmp.eq.s32.totalorder %s18, 0
      %p164 = por %p162, %p163
      %p165 = scmp.ne.s32.totalorder %s157, %s159
      %p166 = scmp.eq.s32.totalorder %s23, 2
      %p167 = por %p165, %p166
      %p168 = scmp.ne.s32.totalorder %s159, %s160
      %p169 = scmp.eq.s32.totalorder %s23, 0
      %p170 = por %p168, %p169
      %p171 = scmp.ne.s32.totalorder %s159, %s160
      %p172 = scmp.eq.s32.totalorder %s24, 2
      %p173 = por %p171, %p172
      %p175 = scmp.ne.s32.totalorder %s160, %s174
      %p176 = scmp.eq.s32.totalorder %s24, 0
      %p177 = por %p175, %p176
      %s178 = ssub.s32 %s18, %s25
      %p179 = scmp.eq.s32.totalorder %s178, 0
      %s181 = sadd.s32 %s180, 1
      %s182 = scalar_select %p179, %s180, %s181
      %p185 = pneg %p179
      %p186 = scmp.eq.s32.totalorder %s18, 2
      %p187 = por %p185, %p186
      %p188 = scmp.ne.s32.totalorder %s180, %s183
      %p189 = scmp.eq.s32.totalorder %s18, 0
      %p190 = por %p188, %p189
      %p191 = scmp.ne.s32.totalorder %s180, %s183
      %p192 = scmp.eq.s32.totalorder %s23, 2
      %p193 = por %p191, %p192
      %p194 = scmp.ne.s32.totalorder %s183, %s184
      %p195 = scmp.eq.s32.totalorder %s23, 0
      %p196 = por %p194, %p195
      %p197 = scmp.ne.s32.totalorder %s183, %s184
      %p198 = scmp.eq.s32.totalorder %s24, 2
      %p199 = por %p197, %p198
      %p201 = scmp.ne.s32.totalorder %s184, %s200
      %p202 = scmp.eq.s32.totalorder %s24, 0
      %p203 = por %p201, %p202
      %p204 = scmp.le.s32.totalorder 1, %s18
      %p205 = scmp.lt.s32.totalorder %s18, 4
      %p206 = pnand %p204, %p205
      %p207 = pneg %p206
      // Predicated region
      $region9: #{tpu_custom_call.1} parent=5 // pred_check
        _
      $region10: #{tpu_custom_call.1} parent=5 // pred_check_branch
        %209 = sbr.rel (%p206) target = $region12
      $region11: #{tpu_custom_call.1} parent=5 // pred_region
        %s210 = ssub.s32 %s18, 1
        // Predicated region
        $region13: #{tpu_custom_call.1} parent=11 // pred_check
          %p211 = pneg %p65
        $region14: #{tpu_custom_call.1} parent=11 // pred_check_branch
          %213 = sbr.rel (%p211) target = $region16
        $region15: #{tpu_custom_call.1} parent=11 // pred_region
          _
        $region16: #{tpu_custom_call.1} parent=11 // pred_fallthru
          _
        // Predicated region
        $region17: #{tpu_custom_call.1} parent=11 // pred_check
          %p214 = pneg %p86
        $region18: #{tpu_custom_call.1} parent=11 // pred_check_branch
          %216 = sbr.rel (%p214) target = $region20
        $region19: #{tpu_custom_call.1} parent=11 // pred_region
          _
        $region20: #{tpu_custom_call.1} parent=11 // pred_fallthru
          _
        // Predicated region
        $region21: #{tpu_custom_call.1} parent=11 // pred_check
          %p217 = pneg %p107
        $region22: #{tpu_custom_call.1} parent=11 // pred_check_branch
          %219 = sbr.rel (%p217) target = $region24
        $region23: #{tpu_custom_call.1} parent=11 // pred_region
          _
        $region24: #{tpu_custom_call.1} parent=11 // pred_fallthru
          _
        // Predicated region
        $region25: #{tpu_custom_call.1} parent=11 // pred_check
          %p220 = pneg %p128
        $region26: #{tpu_custom_call.1} parent=11 // pred_check_branch
          %222 = sbr.rel (%p220) target = $region28
        $region27: #{tpu_custom_call.1} parent=11 // pred_region
          _
        $region28: #{tpu_custom_call.1} parent=11 // pred_fallthru
          _
        // Predicated region
        $region29: #{tpu_custom_call.1} parent=11 // pred_check
          %p223 = pneg %p149
        $region30: #{tpu_custom_call.1} parent=11 // pred_check_branch
          %225 = sbr.rel (%p223) target = $region32
        $region31: #{tpu_custom_call.1} parent=11 // pred_region
          _
        $region32: #{tpu_custom_call.1} parent=11 // pred_fallthru
          _
        // Predicated region
        $region33: #{tpu_custom_call.1} parent=11 // pred_check
          %p226 = pneg %p170
        $region34: #{tpu_custom_call.1} parent=11 // pred_check_branch
          %228 = sbr.rel (%p226) target = $region36
        $region35: #{tpu_custom_call.1} parent=11 // pred_region
          _
        $region36: #{tpu_custom_call.1} parent=11 // pred_fallthru
          _
      $region12: #{tpu_custom_call.1} parent=5 // pred_fallthru
        _
      %p229 = scmp.lt.s32.totalorder %s18, 3
      // Predicated region
      $region37: #{tpu_custom_call.1} parent=5 // pred_check
        %p230 = pneg %p229
      $region38: #{tpu_custom_call.1} parent=5 // pred_check_branch
        %232 = sbr.rel (%p230) target = $region40
      $region39: #{tpu_custom_call.1} parent=5 // pred_region
        // Predicated region
        $region41: #{tpu_custom_call.1} parent=39 // pred_check
          %p233 = pneg %p38
        $region42: #{tpu_custom_call.1} parent=39 // pred_check_branch
          %235 = sbr.rel (%p233) target = $region44
        $region43: #{tpu_custom_call.1} parent=39 // pred_region
          %s236 = smul.u32 16, %s18
          %p237 = scmp.lt.s32.totalorder %s236, 47
          %s238 = scalar_select %p237, %s236, 47
          %s239 = smul.addr %s238, 8
          %s240 = scalar_lea.vmem %s0, %s239
          %s241 = smul.u32 16, %s18
        $region44: #{tpu_custom_call.1} parent=39 // pred_fallthru
          _
      $region40: #{tpu_custom_call.1} parent=5 // pred_fallthru
        _
      %p242 = scmp.le.s32.totalorder 1, %s18
      %p243 = scmp.lt.s32.totalorder %s18, 4
      %p244 = pnand %p242, %p243
      %p245 = pneg %p244
      // Predicated region
      $region45: #{tpu_custom_call.1} parent=5 // pred_check
        _
      $region46: #{tpu_custom_call.1} parent=5 // pred_check_branch
        %247 = sbr.rel (%p244) target = $region48
      $region47: #{tpu_custom_call.1} parent=5 // pred_region
        %s248 = ssub.s32 %s18, 1
        %s249 = smul.u32 16, %s23
        %p250 = scmp.lt.s32.totalorder %s249, 47
        %s251 = scalar_select %p250, %s249, 47
        %s252 = smul.addr %s251, 8
        %s253 = scalar_lea.vmem %s0, %s252
        %p254 = pneg %p44
        %p255 = pneg %p41
        %p256 = pneg %p65
        %p257 = pneg %p62
        %p258 = pneg %p86
        %p259 = pneg %p83
        %p260 = pneg %p107
        %p261 = pneg %p104
        %p262 = pneg %p128
        %p263 = pneg %p125
        %p264 = pneg %p149
        %p265 = pneg %p146
        %p266 = pneg %p170
        %p267 = pneg %p167
        %p268 = pneg %p196
        %p269 = pneg %p193
        %s270 = sand.u32 %s183, 1
        %s271 = scalar_lea.sflag [#allocation4], %s270
        %s272 = sand.u32 %s183, 1
        %s273 = scalar_lea.vmem [#allocation3], %s272
        %s274 = smul.u32 16, %s23
        %p275 = scmp.lt.s32.totalorder %s274, 47
        %s276 = scalar_select %p275, %s274, 47
        %s277 = smul.addr %s276, 8
        %s278 = scalar_lea.vmem %s0, %s277
        %s279 = smul.u32 16, %s23
        %v281 = vld [vmem:[%s278] sm:$0xff]
        %v282 = vld [vmem:[%s278 + $0x8] sm:$0xff]
        %v283 = vld [vmem:[%s278 + $0x10] sm:$0xff]
        %v284 = vld [vmem:[%s278 + $0x18] sm:$0xff]
        %v285 = vld [vmem:[%s278 + $0x20] sm:$0xff]
        %v286 = vld [vmem:[%s278 + $0x28] sm:$0xff]
        %v287 = vld [vmem:[%s278 + $0x30] sm:$0xff]
        %v288 = vld [vmem:[%s278 + $0x38] sm:$0xff]
        %v289 = vld [vmem:[%s278 + $0x40] sm:$0xff]
        %v290 = vld [vmem:[%s278 + $0x48] sm:$0xff]
        %v291 = vld [vmem:[%s278 + $0x50] sm:$0xff]
        %v292 = vld [vmem:[%s278 + $0x58] sm:$0xff]
        %v293 = vld [vmem:[%s278 + $0x60] sm:$0xff]
        %v294 = vld [vmem:[%s278 + $0x68] sm:$0xff]
        %v295 = vld [vmem:[%s278 + $0x70] sm:$0xff]
        %v296 = vld [vmem:[%s278 + $0x78] sm:$0xff]
        %v297 = vpack.c.bf16 %v282, %v281
        %v298 = vpack.c.bf16 %v284, %v283
        %v299 = vpack.c.bf16 %v286, %v285
        %v300 = vpack.c.bf16 %v288, %v287
        %v301 = vpack.c.bf16 %v290, %v289
        %v302 = vpack.c.bf16 %v292, %v291
        %v303 = vpack.c.bf16 %v294, %v293
        %v304 = vpack.c.bf16 %v296, %v295
        %v305 = vld [vmem:[%s1] sm:$0xf]
        %v306 = vld [vmem:[%s1 + $0x4] sm:$0xf]
        %v307 = vld [vmem:[%s1 + $0x8] sm:$0xf]
        %v308 = vld [vmem:[%s1 + $0xc] sm:$0xf]
        %v309 = vld [vmem:[%s1 + $0x10] sm:$0xf]
        %v310 = vld [vmem:[%s1 + $0x14] sm:$0xf]
        %v311 = vld [vmem:[%s1 + $0x18] sm:$0xf]
        %v312 = vld [vmem:[%s1 + $0x1c] sm:$0xf]
        %v313 = vld [vmem:[%s1 + $0x20] sm:$0xf]
        %v314 = vld [vmem:[%s1 + $0x24] sm:$0xf]
        %v315 = vld [vmem:[%s1 + $0x28] sm:$0xf]
        %v316 = vld [vmem:[%s1 + $0x2c] sm:$0xf]
        %v317 = vld [vmem:[%s1 + $0x30] sm:$0xf]
        %v318 = vld [vmem:[%s1 + $0x34] sm:$0xf]
        %v319 = vld [vmem:[%s1 + $0x38] sm:$0xf]
        %v320 = vld [vmem:[%s1 + $0x3c] sm:$0xf]
        %v321 = vld [vmem:[%s1 + $0x40] sm:$0xf]
        %v322 = vld [vmem:[%s1 + $0x44] sm:$0xf]
        %v323 = vld [vmem:[%s1 + $0x48] sm:$0xf]
        %v324 = vld [vmem:[%s1 + $0x4c] sm:$0xf]
        %v325 = vld [vmem:[%s1 + $0x50] sm:$0xf]
        %v326 = vld [vmem:[%s1 + $0x54] sm:$0xf]
        %v327 = vld [vmem:[%s1 + $0x58] sm:$0xf]
        %v328 = vld [vmem:[%s1 + $0x5c] sm:$0xf]
        %v329 = vld [vmem:[%s1 + $0x60] sm:$0xf]
        %v330 = vld [vmem:[%s1 + $0x64] sm:$0xf]
        %v331 = vld [vmem:[%s1 + $0x68] sm:$0xf]
        %v332 = vld [vmem:[%s1 + $0x6c] sm:$0xf]
        %v333 = vld [vmem:[%s1 + $0x70] sm:$0xf]
        %v334 = vld [vmem:[%s1 + $0x74] sm:$0xf]
        %v335 = vld [vmem:[%s1 + $0x78] sm:$0xf]
        %v336 = vld [vmem:[%s1 + $0x7c] sm:$0xf]
        %v337 = vld [vmem:[%s2] sm:$0xff]
        %v338 = vld [vmem:[%s2 + $0x8] sm:$0xff]
        %v339 = vld [vmem:[%s2 + $0x10] sm:$0xff]
        %v340 = vld [vmem:[%s2 + $0x18] sm:$0xff]
        %v341 = vld [vmem:[%s2 + $0x20] sm:$0xff]
        %v342 = vld [vmem:[%s2 + $0x28] sm:$0xff]
        %v343 = vld [vmem:[%s2 + $0x30] sm:$0xff]
        %v344 = vld [vmem:[%s2 + $0x38] sm:$0xff]
        %v345 = vld [vmem:[%s2 + $0x40] sm:$0xff]
        %v346 = vld [vmem:[%s2 + $0x48] sm:$0xff]
        %v347 = vld [vmem:[%s2 + $0x50] sm:$0xff]
        %v348 = vld [vmem:[%s2 + $0x58] sm:$0xff]
        %v349 = vld [vmem:[%s2 + $0x60] sm:$0xff]
        %v350 = vld [vmem:[%s2 + $0x68] sm:$0xff]
        %v351 = vld [vmem:[%s2 + $0x70] sm:$0xff]
        %v352 = vld [vmem:[%s2 + $0x78] sm:$0xff]
        %v353 = vld [vmem:[%s2 + $0x80] sm:$0xff]
        %v354 = vld [vmem:[%s2 + $0x88] sm:$0xff]
        %v355 = vld [vmem:[%s2 + $0x90] sm:$0xff]
        %v356 = vld [vmem:[%s2 + $0x98] sm:$0xff]
        %v357 = vld [vmem:[%s2 + $0xa0] sm:$0xff]
        %v358 = vld [vmem:[%s2 + $0xa8] sm:$0xff]
        %v359 = vld [vmem:[%s2 + $0xb0] sm:$0xff]
        %v360 = vld [vmem:[%s2 + $0xb8] sm:$0xff]
        %v361 = vld [vmem:[%s2 + $0xc0] sm:$0xff]
        %v362 = vld [vmem:[%s2 + $0xc8] sm:$0xff]
        %v363 = vld [vmem:[%s2 + $0xd0] sm:$0xff]
        %v364 = vld [vmem:[%s2 + $0xd8] sm:$0xff]
        %v365 = vld [vmem:[%s2 + $0xe0] sm:$0xff]
        %v366 = vld [vmem:[%s2 + $0xe8] sm:$0xff]
        %v367 = vld [vmem:[%s2 + $0xf0] sm:$0xff]
        %v368 = vld [vmem:[%s2 + $0xf8] sm:$0xff]
        %370 = vset.pattern.permute.xlu0 0
        %371 = vperm.xlu0 %370, %v337
        %v372 = vpop.permute.xlu0 %371
        %375 = vset.pattern.permute.xlu0 0
        %376 = vperm.xlu0 %375, %v338
        %v377 = vpop.permute.xlu0 %376
        %380 = vset.pattern.permute.xlu0 0
        %381 = vperm.xlu0 %380, %v339
        %v382 = vpop.permute.xlu0 %381
        %385 = vset.pattern.permute.xlu0 0
        %386 = vperm.xlu0 %385, %v340
        %v387 = vpop.permute.xlu0 %386
        %390 = vset.pattern.permute.xlu0 0
        %391 = vperm.xlu0 %390, %v341
        %v392 = vpop.permute.xlu0 %391
        %395 = vset.pattern.permute.xlu0 0
        %396 = vperm.xlu0 %395, %v342
        %v397 = vpop.permute.xlu0 %396
        %400 = vset.pattern.permute.xlu0 0
        %401 = vperm.xlu0 %400, %v343
        %v402 = vpop.permute.xlu0 %401
        %405 = vset.pattern.permute.xlu0 0
        %406 = vperm.xlu0 %405, %v344
        %v407 = vpop.permute.xlu0 %406
        %410 = vset.pattern.permute.xlu0 0
        %411 = vperm.xlu0 %410, %v345
        %v412 = vpop.permute.xlu0 %411
        %415 = vset.pattern.permute.xlu0 0
        %416 = vperm.xlu0 %415, %v346
        %v417 = vpop.permute.xlu0 %416
        %420 = vset.pattern.permute.xlu0 0
        %421 = vperm.xlu0 %420, %v347
        %v422 = vpop.permute.xlu0 %421
        %425 = vset.pattern.permute.xlu0 0
        %426 = vperm.xlu0 %425, %v348
        %v427 = vpop.permute.xlu0 %426
        %430 = vset.pattern.permute.xlu0 0
        %431 = vperm.xlu0 %430, %v349
        %v432 = vpop.permute.xlu0 %431
        %435 = vset.pattern.permute.xlu0 0
        %436 = vperm.xlu0 %435, %v350
        %v437 = vpop.permute.xlu0 %436
        %440 = vset.pattern.permute.xlu0 0
        %441 = vperm.xlu0 %440, %v351
        %v442 = vpop.permute.xlu0 %441
        %445 = vset.pattern.permute.xlu0 0
        %446 = vperm.xlu0 %445, %v352
        %v447 = vpop.permute.xlu0 %446
        %450 = vset.pattern.permute.xlu0 0
        %451 = vperm.xlu0 %450, %v353
        %v452 = vpop.permute.xlu0 %451
        %455 = vset.pattern.permute.xlu0 0
        %456 = vperm.xlu0 %455, %v354
        %v457 = vpop.permute.xlu0 %456
        %460 = vset.pattern.permute.xlu0 0
        %461 = vperm.xlu0 %460, %v355
        %v462 = vpop.permute.xlu0 %461
        %465 = vset.pattern.permute.xlu0 0
        %466 = vperm.xlu0 %465, %v356
        %v467 = vpop.permute.xlu0 %466
        %470 = vset.pattern.permute.xlu0 0
        %471 = vperm.xlu0 %470, %v357
        %v472 = vpop.permute.xlu0 %471
        %475 = vset.pattern.permute.xlu0 0
        %476 = vperm.xlu0 %475, %v358
        %v477 = vpop.permute.xlu0 %476
        %480 = vset.pattern.permute.xlu0 0
        %481 = vperm.xlu0 %480, %v359
        %v482 = vpop.permute.xlu0 %481
        %485 = vset.pattern.permute.xlu0 0
        %486 = vperm.xlu0 %485, %v360
        %v487 = vpop.permute.xlu0 %486
        %490 = vset.pattern.permute.xlu0 0
        %491 = vperm.xlu0 %490, %v361
        %v492 = vpop.permute.xlu0 %491
        %495 = vset.pattern.permute.xlu0 0
        %496 = vperm.xlu0 %495, %v362
        %v497 = vpop.permute.xlu0 %496
        %500 = vset.pattern.permute.xlu0 0
        %501 = vperm.xlu0 %500, %v363
        %v502 = vpop.permute.xlu0 %501
        %505 = vset.pattern.permute.xlu0 0
        %506 = vperm.xlu0 %505, %v364
        %v507 = vpop.permute.xlu0 %506
        %510 = vset.pattern.permute.xlu0 0
        %511 = vperm.xlu0 %510, %v365
        %v512 = vpop.permute.xlu0 %511
        %515 = vset.pattern.permute.xlu0 0
        %516 = vperm.xlu0 %515, %v366
        %v517 = vpop.permute.xlu0 %516
        %520 = vset.pattern.permute.xlu0 0
        %521 = vperm.xlu0 %520, %v367
        %v522 = vpop.permute.xlu0 %521
        %525 = vset.pattern.permute.xlu0 0
        %526 = vperm.xlu0 %525, %v368
        %v527 = vpop.permute.xlu0 %526
        %v561 = vunpack.c.l.b16 %v305
        %v562 = vunpack.c.l.b16 %v306
        %v563 = vunpack.c.l.b16 %v307
        %v564 = vunpack.c.l.b16 %v308
        %v565 = vunpack.c.l.b16 %v309
        %v566 = vunpack.c.l.b16 %v310
        %v567 = vunpack.c.l.b16 %v311
        %v568 = vunpack.c.l.b16 %v312
        %v569 = vunpack.c.l.b16 %v313
        %v570 = vunpack.c.l.b16 %v314
        %v571 = vunpack.c.l.b16 %v315
        %v572 = vunpack.c.l.b16 %v316
        %v573 = vunpack.c.l.b16 %v317
        %v574 = vunpack.c.l.b16 %v318
        %v575 = vunpack.c.l.b16 %v319
        %v576 = vunpack.c.l.b16 %v320
        %v577 = vunpack.c.l.b16 %v321
        %v578 = vunpack.c.l.b16 %v322
        %v579 = vunpack.c.l.b16 %v323
        %v580 = vunpack.c.l.b16 %v324
        %v581 = vunpack.c.l.b16 %v325
        %v582 = vunpack.c.l.b16 %v326
        %v583 = vunpack.c.l.b16 %v327
        %v584 = vunpack.c.l.b16 %v328
        %v585 = vunpack.c.l.b16 %v329
        %v586 = vunpack.c.l.b16 %v330
        %v587 = vunpack.c.l.b16 %v331
        %v588 = vunpack.c.l.b16 %v332
        %v589 = vunpack.c.l.b16 %v333
        %v590 = vunpack.c.l.b16 %v334
        %v591 = vunpack.c.l.b16 %v335
        %v592 = vunpack.c.l.b16 %v336
        %v593 = vpack.c.b16 %v562, %v561
        %v594 = vpack.c.b16 %v564, %v563
        %v595 = vpack.c.b16 %v566, %v565
        %v596 = vpack.c.b16 %v568, %v567
        %v597 = vpack.c.b16 %v570, %v569
        %v598 = vpack.c.b16 %v572, %v571
        %v599 = vpack.c.b16 %v574, %v573
        %v600 = vpack.c.b16 %v576, %v575
        %v601 = vpack.c.b16 %v578, %v577
        %v602 = vpack.c.b16 %v580, %v579
        %v603 = vpack.c.b16 %v582, %v581
        %v604 = vpack.c.b16 %v584, %v583
        %v605 = vpack.c.b16 %v586, %v585
        %v606 = vpack.c.b16 %v588, %v587
        %v607 = vpack.c.b16 %v590, %v589
        %v608 = vpack.c.b16 %v592, %v591
        %vm609 = vcmask 130048
        %v611 = vsel %vm609, %v593, 0
        %v614 = vsel %vm609, %v594, 0
        %v617 = vsel %vm609, %v595, 0
        %v620 = vsel %vm609, %v596, 0
        %v623 = vsel %vm609, %v597, 0
        %v626 = vsel %vm609, %v598, 0
        %v629 = vsel %vm609, %v599, 0
        %v632 = vsel %vm609, %v600, 0
        %v635 = vsel %vm609, %v601, 0
        %v638 = vsel %vm609, %v602, 0
        %v641 = vsel %vm609, %v603, 0
        %v644 = vsel %vm609, %v604, 0
        %v647 = vsel %vm609, %v605, 0
        %v650 = vsel %vm609, %v606, 0
        %v653 = vsel %vm609, %v607, 0
        %v656 = vsel %vm609, %v608, 0
        %v659 = vsel %vm609, %v297, 0
        %v662 = vsel %vm609, %v298, 0
        %v665 = vsel %vm609, %v299, 0
        %v668 = vsel %vm609, %v300, 0
        %v671 = vsel %vm609, %v301, 0
        %v674 = vsel %vm609, %v302, 0
        %v677 = vsel %vm609, %v303, 0
        %v680 = vsel %vm609, %v304, 0
        %682 = vmatprep.subr.bf16.mxu0 0
        %683 = vmatpush1.bf16.xpose.msra.mxu0 %v659
        %684 = vmatprep.subr.bf16.mxu0 0
        %685 = vmatpush1.bf16.xpose.msra.mxu0 %v662
        %686 = vmatprep.subr.bf16.mxu0 0
        %687 = vmatpush1.bf16.xpose.msra.mxu0 %v665
        %688 = vmatprep.subr.bf16.mxu0 0
        %689 = vmatpush1.bf16.xpose.msra.mxu0 %v668
        %690 = vmatprep.subr.bf16.mxu0 0
        %691 = vmatpush1.bf16.xpose.msra.mxu0 %v671
        %692 = vmatprep.subr.bf16.mxu0 0
        %693 = vmatpush1.bf16.xpose.msra.mxu0 %v674
        %694 = vmatprep.subr.bf16.mxu0 0
        %695 = vmatpush1.bf16.xpose.msra.mxu0 %v677
        %696 = vmatprep.subr.bf16.mxu0 0
        %697 = vmatpush1.bf16.xpose.msra.mxu0 %v680
        %698 = vmatprep.subr.bf16.mxu0 0
        %699 = vmatpush1.bf16.xpose.msra.mxu0 0
        %700 = vmatprep.subr.bf16.mxu0 0
        %701 = vmatpush1.bf16.xpose.msra.mxu0 0
        %702 = vmatprep.subr.bf16.mxu0 0
        %703 = vmatpush1.bf16.xpose.msra.mxu0 0
        %704 = vmatprep.subr.bf16.mxu0 0
        %705 = vmatpush1.bf16.xpose.msra.mxu0 0
        %706 = vmatprep.subr.bf16.mxu0 0
        %707 = vmatpush1.bf16.xpose.msra.mxu0 0
        %708 = vmatprep.subr.bf16.mxu0 0
        %709 = vmatpush1.bf16.xpose.msra.mxu0 0
        %710 = vmatprep.subr.bf16.mxu0 0
        %711 = vmatpush1.bf16.xpose.msra.mxu0 0
        %712 = vmatprep.subr.bf16.mxu0 0
        %713 = vmatpush1.bf16.xpose.msra.mxu0 0
        %714 = vmatprep.mubr.bf16.mxu0 0
        %715 = vmatmul.mubr.bf16.gmra.mrb[0].mxu0 %v611
        %v716 = vpop.f32.mrb[0].mxu0
        %v717 = vadd.f32 %v372, %v716
        %v718 = vpop.f32.mrb[0].mxu0
        %v719 = vpop.f32.mrb[0].mxu0
        %v720 = vadd.f32 %v377, %v719
        %v721 = vpop.f32.mrb[0].mxu0
        %722 = vmatprep.mubr.bf16.mxu0 0
        %723 = vmatmul.mubr.bf16.gmra.mrb[0].mxu0 %v614
        %v724 = vpop.f32.mrb[0].mxu0
        %v725 = vadd.f32 %v382, %v724
        %v726 = vpop.f32.mrb[0].mxu0
        %v727 = vpop.f32.mrb[0].mxu0
        %v728 = vadd.f32 %v387, %v727
        %v729 = vpop.f32.mrb[0].mxu0
        %730 = vmatprep.mubr.bf16.mxu0 0
        %731 = vmatmul.mubr.bf16.gmra.mrb[0].mxu0 %v617
        %v732 = vpop.f32.mrb[0].mxu0
        %v733 = vadd.f32 %v392, %v732
        %v734 = vpop.f32.mrb[0].mxu0
        %v735 = vpop.f32.mrb[0].mxu0
        %v736 = vadd.f32 %v397, %v735
        %v737 = vpop.f32.mrb[0].mxu0
        %738 = vmatprep.mubr.bf16.mxu0 0
        %739 = vmatmul.mubr.bf16.gmra.mrb[0].mxu0 %v620
        %v740 = vpop.f32.mrb[0].mxu0
        %v741 = vadd.f32 %v402, %v740
        %v742 = vpop.f32.mrb[0].mxu0
        %v743 = vpop.f32.mrb[0].mxu0
        %v744 = vadd.f32 %v407, %v743
        %v745 = vpop.f32.mrb[0].mxu0
        %746 = vmatprep.mubr.bf16.mxu0 0
        %747 = vmatmul.mubr.bf16.gmra.mrb[0].mxu0 %v623
        %v748 = vpop.f32.mrb[0].mxu0
        %v749 = vadd.f32 %v412, %v748
        %v750 = vpop.f32.mrb[0].mxu0
        %v751 = vpop.f32.mrb[0].mxu0
        %v752 = vadd.f32 %v417, %v751
        %v753 = vpop.f32.mrb[0].mxu0
        %754 = vmatprep.mubr.bf16.mxu0 0
        %755 = vmatmul.mubr.bf16.gmra.mrb[0].mxu0 %v626
        %v756 = vpop.f32.mrb[0].mxu0
        %v757 = vadd.f32 %v422, %v756
        %v758 = vpop.f32.mrb[0].mxu0
        %v759 = vpop.f32.mrb[0].mxu0
        %v760 = vadd.f32 %v427, %v759
        %v761 = vpop.f32.mrb[0].mxu0
        %762 = vmatprep.mubr.bf16.mxu0 0
        %763 = vmatmul.mubr.bf16.gmra.mrb[0].mxu0 %v629
        %v764 = vpop.f32.mrb[0].mxu0
        %v765 = vadd.f32 %v432, %v764
        %v766 = vpop.f32.mrb[0].mxu0
        %v767 = vpop.f32.mrb[0].mxu0
        %v768 = vadd.f32 %v437, %v767
        %v769 = vpop.f32.mrb[0].mxu0
        %770 = vmatprep.mubr.bf16.mxu0 0
        %771 = vmatmul.mubr.bf16.gmra.mrb[0].mxu0 %v632
        %v772 = vpop.f32.mrb[0].mxu0
        %v773 = vadd.f32 %v442, %v772
        %v774 = vpop.f32.mrb[0].mxu0
        %v775 = vpop.f32.mrb[0].mxu0
        %v776 = vadd.f32 %v447, %v775
        %v777 = vpop.f32.mrb[0].mxu0
        %778 = vmatprep.mubr.bf16.mxu0 0
        %779 = vmatmul.mubr.bf16.gmra.mrb[0].mxu0 %v635
        %v780 = vpop.f32.mrb[0].mxu0
        %v781 = vadd.f32 %v452, %v780
        %v782 = vpop.f32.mrb[0].mxu0
        %v783 = vpop.f32.mrb[0].mxu0
        %v784 = vadd.f32 %v457, %v783
        %v785 = vpop.f32.mrb[0].mxu0
        %786 = vmatprep.mubr.bf16.mxu0 0
        %787 = vmatmul.mubr.bf16.gmra.mrb[0].mxu0 %v638
        %v788 = vpop.f32.mrb[0].mxu0
        %v789 = vadd.f32 %v462, %v788
        %v790 = vpop.f32.mrb[0].mxu0
        %v791 = vpop.f32.mrb[0].mxu0
        %v792 = vadd.f32 %v467, %v791
        %v793 = vpop.f32.mrb[0].mxu0
        %794 = vmatprep.mubr.bf16.mxu0 0
        %795 = vmatmul.mubr.bf16.gmra.mrb[0].mxu0 %v641
        %v796 = vpop.f32.mrb[0].mxu0
        %v797 = vadd.f32 %v472, %v796
        %v798 = vpop.f32.mrb[0].mxu0
        %v799 = vpop.f32.mrb[0].mxu0
        %v800 = vadd.f32 %v477, %v799
        %v801 = vpop.f32.mrb[0].mxu0
        %802 = vmatprep.mubr.bf16.mxu0 0
        %803 = vmatmul.mubr.bf16.gmra.mrb[0].mxu0 %v644
        %v804 = vpop.f32.mrb[0].mxu0
        %v805 = vadd.f32 %v482, %v804
        %v806 = vpop.f32.mrb[0].mxu0
        %v807 = vpop.f32.mrb[0].mxu0
        %v808 = vadd.f32 %v487, %v807
        %v809 = vpop.f32.mrb[0].mxu0
        %810 = vmatprep.mubr.bf16.mxu0 0
        %811 = vmatmul.mubr.bf16.gmra.mrb[0].mxu0 %v647
        %v812 = vpop.f32.mrb[0].mxu0
        %v813 = vadd.f32 %v492, %v812
        %v814 = vpop.f32.mrb[0].mxu0
        %v815 = vpop.f32.mrb[0].mxu0
        %v816 = vadd.f32 %v497, %v815
        %v817 = vpop.f32.mrb[0].mxu0
        %818 = vmatprep.mubr.bf16.mxu0 0
        %819 = vmatmul.mubr.bf16.gmra.mrb[0].mxu0 %v650
        %v820 = vpop.f32.mrb[0].mxu0
        %v821 = vadd.f32 %v502, %v820
        %v822 = vpop.f32.mrb[0].mxu0
        %v823 = vpop.f32.mrb[0].mxu0
        %v824 = vadd.f32 %v507, %v823
        %v825 = vpop.f32.mrb[0].mxu0
        %826 = vmatprep.mubr.bf16.mxu0 0
        %827 = vmatmul.mubr.bf16.gmra.mrb[0].mxu0 %v653
        %v828 = vpop.f32.mrb[0].mxu0
        %v829 = vadd.f32 %v512, %v828
        %v830 = vpop.f32.mrb[0].mxu0
        %v831 = vpop.f32.mrb[0].mxu0
        %v832 = vadd.f32 %v517, %v831
        %v833 = vpop.f32.mrb[0].mxu0
        %834 = vmatprep.mubr.bf16.mxu0 0
        %835 = vmatmul.mubr.bf16.gmra.mrb[0].mxu0 %v656
        %v836 = vpop.f32.mrb[0].mxu0
        %v837 = vadd.f32 %v522, %v836
        %v838 = vpop.f32.mrb[0].mxu0
        %v839 = vpop.f32.mrb[0].mxu0
        %v840 = vadd.f32 %v527, %v839
        %v841 = vpop.f32.mrb[0].mxu0
        %842 = vdwg.mxu0
        %v843 = vmax.f32 %v717, 0.0
        %v844 = vmax.f32 %v720, 0.0
        %v845 = vmax.f32 %v725, 0.0
        %v846 = vmax.f32 %v728, 0.0
        %v847 = vmax.f32 %v733, 0.0
        %v848 = vmax.f32 %v736, 0.0
        %v849 = vmax.f32 %v741, 0.0
        %v850 = vmax.f32 %v744, 0.0
        %v851 = vmax.f32 %v749, 0.0
        %v852 = vmax.f32 %v752, 0.0
        %v853 = vmax.f32 %v757, 0.0
        %v854 = vmax.f32 %v760, 0.0
        %v855 = vmax.f32 %v765, 0.0
        %v856 = vmax.f32 %v768, 0.0
        %v857 = vmax.f32 %v773, 0.0
        %v858 = vmax.f32 %v776, 0.0
        %v859 = vmax.f32 %v781, 0.0
        %v860 = vmax.f32 %v784, 0.0
        %v861 = vmax.f32 %v789, 0.0
        %v862 = vmax.f32 %v792, 0.0
        %v863 = vmax.f32 %v797, 0.0
        %v864 = vmax.f32 %v800, 0.0
        %v865 = vmax.f32 %v805, 0.0
        %v866 = vmax.f32 %v808, 0.0
        %v867 = vmax.f32 %v813, 0.0
        %v868 = vmax.f32 %v816, 0.0
        %v869 = vmax.f32 %v821, 0.0
        %v870 = vmax.f32 %v824, 0.0
        %v871 = vmax.f32 %v829, 0.0
        %v872 = vmax.f32 %v832, 0.0
        %v873 = vmax.f32 %v837, 0.0
        %v874 = vmax.f32 %v840, 0.0
        %v875 = vld [vmem:[%s3] sm:$0xff]
        %v876 = vld [vmem:[%s3 + $0x8] sm:$0xff]
        %v877 = vld [vmem:[%s3 + $0x10] sm:$0xff]
        %v878 = vld [vmem:[%s3 + $0x18] sm:$0xff]
        %v879 = vld [vmem:[%s3 + $0x20] sm:$0xff]
        %v880 = vld [vmem:[%s3 + $0x28] sm:$0xff]
        %v881 = vld [vmem:[%s3 + $0x30] sm:$0xff]
        %v882 = vld [vmem:[%s3 + $0x38] sm:$0xff]
        %v883 = vld [vmem:[%s3 + $0x40] sm:$0xff]
        %v884 = vld [vmem:[%s3 + $0x48] sm:$0xff]
        %v885 = vld [vmem:[%s3 + $0x50] sm:$0xff]
        %v886 = vld [vmem:[%s3 + $0x58] sm:$0xff]
        %v887 = vld [vmem:[%s3 + $0x60] sm:$0xff]
        %v888 = vld [vmem:[%s3 + $0x68] sm:$0xff]
        %v889 = vld [vmem:[%s3 + $0x70] sm:$0xff]
        %v890 = vld [vmem:[%s3 + $0x78] sm:$0xff]
        %v891 = vld [vmem:[%s3 + $0x80] sm:$0xff]
        %v892 = vld [vmem:[%s3 + $0x88] sm:$0xff]
        %v893 = vld [vmem:[%s3 + $0x90] sm:$0xff]
        %v894 = vld [vmem:[%s3 + $0x98] sm:$0xff]
        %v895 = vld [vmem:[%s3 + $0xa0] sm:$0xff]
        %v896 = vld [vmem:[%s3 + $0xa8] sm:$0xff]
        %v897 = vld [vmem:[%s3 + $0xb0] sm:$0xff]
        %v898 = vld [vmem:[%s3 + $0xb8] sm:$0xff]
        %v899 = vld [vmem:[%s3 + $0xc0] sm:$0xff]
        %v900 = vld [vmem:[%s3 + $0xc8] sm:$0xff]
        %v901 = vld [vmem:[%s3 + $0xd0] sm:$0xff]
        %v902 = vld [vmem:[%s3 + $0xd8] sm:$0xff]
        %v903 = vld [vmem:[%s3 + $0xe0] sm:$0xff]
        %v904 = vld [vmem:[%s3 + $0xe8] sm:$0xff]
        %v905 = vld [vmem:[%s3 + $0xf0] sm:$0xff]
        %v906 = vld [vmem:[%s3 + $0xf8] sm:$0xff]
        %v907 = vpack.c.bf16 %v844, %v843
        %v908 = vpack.c.bf16 %v846, %v845
        %v909 = vpack.c.bf16 %v848, %v847
        %v910 = vpack.c.bf16 %v850, %v849
        %v911 = vpack.c.bf16 %v852, %v851
        %v912 = vpack.c.bf16 %v854, %v853
        %v913 = vpack.c.bf16 %v856, %v855
        %v914 = vpack.c.bf16 %v858, %v857
        %v915 = vpack.c.bf16 %v860, %v859
        %v916 = vpack.c.bf16 %v862, %v861
        %v917 = vpack.c.bf16 %v864, %v863
        %v918 = vpack.c.bf16 %v866, %v865
        %v919 = vpack.c.bf16 %v868, %v867
        %v920 = vpack.c.bf16 %v870, %v869
        %v921 = vpack.c.bf16 %v872, %v871
        %v922 = vpack.c.bf16 %v874, %v873
        %v923 = vld [vmem:[%s4] sm:$0xff]
        %v924 = vld [vmem:[%s4 + $0x8] sm:$0xff]
        %v925 = vld [vmem:[%s4 + $0x10] sm:$0xff]
        %v926 = vld [vmem:[%s4 + $0x18] sm:$0xff]
        %v927 = vld [vmem:[%s4 + $0x20] sm:$0xff]
        %v928 = vld [vmem:[%s4 + $0x28] sm:$0xff]
        %v929 = vld [vmem:[%s4 + $0x30] sm:$0xff]
        %v930 = vld [vmem:[%s4 + $0x38] sm:$0xff]
        %v931 = vld [vmem:[%s4 + $0x40] sm:$0xff]
        %v932 = vld [vmem:[%s4 + $0x48] sm:$0xff]
        %v933 = vld [vmem:[%s4 + $0x50] sm:$0xff]
        %v934 = vld [vmem:[%s4 + $0x58] sm:$0xff]
        %v935 = vld [vmem:[%s4 + $0x60] sm:$0xff]
        %v936 = vld [vmem:[%s4 + $0x68] sm:$0xff]
        %v937 = vld [vmem:[%s4 + $0x70] sm:$0xff]
        %v938 = vld [vmem:[%s4 + $0x78] sm:$0xff]
        %v939 = vld [vmem:[%s4 + $0x80] sm:$0xff]
        %v940 = vld [vmem:[%s4 + $0x88] sm:$0xff]
        %v941 = vld [vmem:[%s4 + $0x90] sm:$0xff]
        %v942 = vld [vmem:[%s4 + $0x98] sm:$0xff]
        %v943 = vld [vmem:[%s4 + $0xa0] sm:$0xff]
        %v944 = vld [vmem:[%s4 + $0xa8] sm:$0xff]
        %v945 = vld [vmem:[%s4 + $0xb0] sm:$0xff]
        %v946 = vld [vmem:[%s4 + $0xb8] sm:$0xff]
        %v947 = vld [vmem:[%s4 + $0xc0] sm:$0xff]
        %v948 = vld [vmem:[%s4 + $0xc8] sm:$0xff]
        %v949 = vld [vmem:[%s4 + $0xd0] sm:$0xff]
        %v950 = vld [vmem:[%s4 + $0xd8] sm:$0xff]
        %v951 = vld [vmem:[%s4 + $0xe0] sm:$0xff]
        %v952 = vld [vmem:[%s4 + $0xe8] sm:$0xff]
        %v953 = vld [vmem:[%s4 + $0xf0] sm:$0xff]
        %v954 = vld [vmem:[%s4 + $0xf8] sm:$0xff]
        %956 = vset.pattern.permute.xlu0 0
        %957 = vperm.xlu0 %956, %v923
        %v958 = vpop.permute.xlu0 %957
        %961 = vset.pattern.permute.xlu0 0
        %962 = vperm.xlu0 %961, %v924
        %v963 = vpop.permute.xlu0 %962
        %966 = vset.pattern.permute.xlu0 0
        %967 = vperm.xlu0 %966, %v925
        %v968 = vpop.permute.xlu0 %967
        %971 = vset.pattern.permute.xlu0 0
        %972 = vperm.xlu0 %971, %v926
        %v973 = vpop.permute.xlu0 %972
        %976 = vset.pattern.permute.xlu0 0
        %977 = vperm.xlu0 %976, %v927
        %v978 = vpop.permute.xlu0 %977
        %981 = vset.pattern.permute.xlu0 0
        %982 = vperm.xlu0 %981, %v928
        %v983 = vpop.permute.xlu0 %982
        %986 = vset.pattern.permute.xlu0 0
        %987 = vperm.xlu0 %986, %v929
        %v988 = vpop.permute.xlu0 %987
        %991 = vset.pattern.permute.xlu0 0
        %992 = vperm.xlu0 %991, %v930
        %v993 = vpop.permute.xlu0 %992
        %996 = vset.pattern.permute.xlu0 0
        %997 = vperm.xlu0 %996, %v931
        %v998 = vpop.permute.xlu0 %997
        %1001 = vset.pattern.permute.xlu0 0
        %1002 = vperm.xlu0 %1001, %v932
        %v1003 = vpop.permute.xlu0 %1002
        %1006 = vset.pattern.permute.xlu0 0
        %1007 = vperm.xlu0 %1006, %v933
        %v1008 = vpop.permute.xlu0 %1007
        %1011 = vset.pattern.permute.xlu0 0
        %1012 = vperm.xlu0 %1011, %v934
        %v1013 = vpop.permute.xlu0 %1012
        %1016 = vset.pattern.permute.xlu0 0
        %1017 = vperm.xlu0 %1016, %v935
        %v1018 = vpop.permute.xlu0 %1017
        %1021 = vset.pattern.permute.xlu0 0
        %1022 = vperm.xlu0 %1021, %v936
        %v1023 = vpop.permute.xlu0 %1022
        %1026 = vset.pattern.permute.xlu0 0
        %1027 = vperm.xlu0 %1026, %v937
        %v1028 = vpop.permute.xlu0 %1027
        %1031 = vset.pattern.permute.xlu0 0
        %1032 = vperm.xlu0 %1031, %v938
        %v1033 = vpop.permute.xlu0 %1032
        %1036 = vset.pattern.permute.xlu0 0
        %1037 = vperm.xlu0 %1036, %v939
        %v1038 = vpop.permute.xlu0 %1037
        %1041 = vset.pattern.permute.xlu0 0
        %1042 = vperm.xlu0 %1041, %v940
        %v1043 = vpop.permute.xlu0 %1042
        %1046 = vset.pattern.permute.xlu0 0
        %1047 = vperm.xlu0 %1046, %v941
        %v1048 = vpop.permute.xlu0 %1047
        %1051 = vset.pattern.permute.xlu0 0
        %1052 = vperm.xlu0 %1051, %v942
        %v1053 = vpop.permute.xlu0 %1052
        %1056 = vset.pattern.permute.xlu0 0
        %1057 = vperm.xlu0 %1056, %v943
        %v1058 = vpop.permute.xlu0 %1057
        %1061 = vset.pattern.permute.xlu0 0
        %1062 = vperm.xlu0 %1061, %v944
        %v1063 = vpop.permute.xlu0 %1062
        %1066 = vset.pattern.permute.xlu0 0
        %1067 = vperm.xlu0 %1066, %v945
        %v1068 = vpop.permute.xlu0 %1067
        %1071 = vset.pattern.permute.xlu0 0
        %1072 = vperm.xlu0 %1071, %v946
        %v1073 = vpop.permute.xlu0 %1072
        %1076 = vset.pattern.permute.xlu0 0
        %1077 = vperm.xlu0 %1076, %v947
        %v1078 = vpop.permute.xlu0 %1077
        %1081 = vset.pattern.permute.xlu0 0
        %1082 = vperm.xlu0 %1081, %v948
        %v1083 = vpop.permute.xlu0 %1082
        %1086 = vset.pattern.permute.xlu0 0
        %1087 = vperm.xlu0 %1086, %v949
        %v1088 = vpop.permute.xlu0 %1087
        %1091 = vset.pattern.permute.xlu0 0
        %1092 = vperm.xlu0 %1091, %v950
        %v1093 = vpop.permute.xlu0 %1092
        %1096 = vset.pattern.permute.xlu0 0
        %1097 = vperm.xlu0 %1096, %v951
        %v1098 = vpop.permute.xlu0 %1097
        %1101 = vset.pattern.permute.xlu0 0
        %1102 = vperm.xlu0 %1101, %v952
        %v1103 = vpop.permute.xlu0 %1102
        %1106 = vset.pattern.permute.xlu0 0
        %1107 = vperm.xlu0 %1106, %v953
        %v1108 = vpop.permute.xlu0 %1107
        %1111 = vset.pattern.permute.xlu0 0
        %1112 = vperm.xlu0 %1111, %v954
        %v1113 = vpop.permute.xlu0 %1112
        %v1147 = vunpack.c.l.b16 %v875
        %v1148 = vunpack.c.h.b16 %v875
        %v1149 = vunpack.c.l.b16 %v876
        %v1150 = vunpack.c.h.b16 %v876
        %v1151 = vunpack.c.l.b16 %v877
        %v1152 = vunpack.c.h.b16 %v877
        %v1153 = vunpack.c.l.b16 %v878
        %v1154 = vunpack.c.h.b16 %v878
        %v1155 = vunpack.c.l.b16 %v879
        %v1156 = vunpack.c.h.b16 %v879
        %v1157 = vunpack.c.l.b16 %v880
        %v1158 = vunpack.c.h.b16 %v880
        %v1159 = vunpack.c.l.b16 %v881
        %v1160 = vunpack.c.h.b16 %v881
        %v1161 = vunpack.c.l.b16 %v882
        %v1162 = vunpack.c.h.b16 %v882
        %v1163 = vunpack.c.l.b16 %v883
        %v1164 = vunpack.c.h.b16 %v883
        %v1165 = vunpack.c.l.b16 %v884
        %v1166 = vunpack.c.h.b16 %v884
        %v1167 = vunpack.c.l.b16 %v885
        %v1168 = vunpack.c.h.b16 %v885
        %v1169 = vunpack.c.l.b16 %v886
        %v1170 = vunpack.c.h.b16 %v886
        %v1171 = vunpack.c.l.b16 %v887
        %v1172 = vunpack.c.h.b16 %v887
        %v1173 = vunpack.c.l.b16 %v888
        %v1174 = vunpack.c.h.b16 %v888
        %v1175 = vunpack.c.l.b16 %v889
        %v1176 = vunpack.c.h.b16 %v889
        %v1177 = vunpack.c.l.b16 %v890
        %v1178 = vunpack.c.h.b16 %v890
        %v1179 = vunpack.c.l.b16 %v891
        %v1180 = vunpack.c.h.b16 %v891
        %v1181 = vunpack.c.l.b16 %v892
        %v1182 = vunpack.c.h.b16 %v892
        %v1183 = vunpack.c.l.b16 %v893
        %v1184 = vunpack.c.h.b16 %v893
        %v1185 = vunpack.c.l.b16 %v894
        %v1186 = vunpack.c.h.b16 %v894
        %v1187 = vunpack.c.l.b16 %v895
        %v1188 = vunpack.c.h.b16 %v895
        %v1189 = vunpack.c.l.b16 %v896
        %v1190 = vunpack.c.h.b16 %v896
        %v1191 = vunpack.c.l.b16 %v897
        %v1192 = vunpack.c.h.b16 %v897
        %v1193 = vunpack.c.l.b16 %v898
        %v1194 = vunpack.c.h.b16 %v898
        %v1195 = vunpack.c.l.b16 %v899
        %v1196 = vunpack.c.h.b16 %v899
        %v1197 = vunpack.c.l.b16 %v900
        %v1198 = vunpack.c.h.b16 %v900
        %v1199 = vunpack.c.l.b16 %v901
        %v1200 = vunpack.c.h.b16 %v901
        %v1201 = vunpack.c.l.b16 %v902
        %v1202 = vunpack.c.h.b16 %v902
        %v1203 = vunpack.c.l.b16 %v903
        %v1204 = vunpack.c.h.b16 %v903
        %v1205 = vunpack.c.l.b16 %v904
        %v1206 = vunpack.c.h.b16 %v904
        %v1207 = vunpack.c.l.b16 %v905
        %v1208 = vunpack.c.h.b16 %v905
        %v1209 = vunpack.c.l.b16 %v906
        %v1210 = vunpack.c.h.b16 %v906
        %v1211 = vpack.c.b16 %v1149, %v1147
        %v1212 = vpack.c.b16 %v1150, %v1148
        %v1213 = vpack.c.b16 %v1153, %v1151
        %v1214 = vpack.c.b16 %v1154, %v1152
        %v1215 = vpack.c.b16 %v1157, %v1155
        %v1216 = vpack.c.b16 %v1158, %v1156
        %v1217 = vpack.c.b16 %v1161, %v1159
        %v1218 = vpack.c.b16 %v1162, %v1160
        %v1219 = vpack.c.b16 %v1165, %v1163
        %v1220 = vpack.c.b16 %v1166, %v1164
        %v1221 = vpack.c.b16 %v1169, %v1167
        %v1222 = vpack.c.b16 %v1170, %v1168
        %v1223 = vpack.c.b16 %v1173, %v1171
        %v1224 = vpack.c.b16 %v1174, %v1172
        %v1225 = vpack.c.b16 %v1177, %v1175
        %v1226 = vpack.c.b16 %v1178, %v1176
        %v1227 = vpack.c.b16 %v1181, %v1179
        %v1228 = vpack.c.b16 %v1182, %v1180
        %v1229 = vpack.c.b16 %v1185, %v1183
        %v1230 = vpack.c.b16 %v1186, %v1184
        %v1231 = vpack.c.b16 %v1189, %v1187
        %v1232 = vpack.c.b16 %v1190, %v1188
        %v1233 = vpack.c.b16 %v1193, %v1191
        %v1234 = vpack.c.b16 %v1194, %v1192
        %v1235 = vpack.c.b16 %v1197, %v1195
        %v1236 = vpack.c.b16 %v1198, %v1196
        %v1237 = vpack.c.b16 %v1201, %v1199
        %v1238 = vpack.c.b16 %v1202, %v1200
        %v1239 = vpack.c.b16 %v1205, %v1203
        %v1240 = vpack.c.b16 %v1206, %v1204
        %v1241 = vpack.c.b16 %v1209, %v1207
        %v1242 = vpack.c.b16 %v1210, %v1208
        %1275 = vmatprep.subr.bf16.mxu0 0
        %1276 = vmatpush1.bf16.msra.mxu0 %v907
        %1277 = vmatprep.subr.bf16.mxu0 0
        %1278 = vmatpush1.bf16.msra.mxu0 %v908
        %1279 = vmatprep.subr.bf16.mxu0 0
        %1280 = vmatpush1.bf16.msra.mxu0 %v909
        %1281 = vmatprep.subr.bf16.mxu0 0
        %1282 = vmatpush1.bf16.msra.mxu0 %v910
        %1283 = vmatprep.subr.bf16.mxu0 0
        %1284 = vmatpush1.bf16.msra.mxu0 %v911
        %1285 = vmatprep.subr.bf16.mxu0 0
        %1286 = vmatpush1.bf16.msra.mxu0 %v912
        %1287 = vmatprep.subr.bf16.mxu0 0
        %1288 = vmatpush1.bf16.msra.mxu0 %v913
        %1289 = vmatprep.subr.bf16.mxu0 0
        %1290 = vmatpush1.bf16.msra.mxu0 %v914
        %1291 = vmatprep.subr.bf16.mxu0 0
        %1292 = vmatpush1.bf16.msra.mxu0 %v915
        %1293 = vmatprep.subr.bf16.mxu0 0
        %1294 = vmatpush1.bf16.msra.mxu0 %v916
        %1295 = vmatprep.subr.bf16.mxu0 0
        %1296 = vmatpush1.bf16.msra.mxu0 %v917
        %1297 = vmatprep.subr.bf16.mxu0 0
        %1298 = vmatpush1.bf16.msra.mxu0 %v918
        %1299 = vmatprep.subr.bf16.mxu0 0
        %1300 = vmatpush1.bf16.msra.mxu0 %v919
        %1301 = vmatprep.subr.bf16.mxu0 0
        %1302 = vmatpush1.bf16.msra.mxu0 %v920
        %1303 = vmatprep.subr.bf16.mxu0 0
        %1304 = vmatpush1.bf16.msra.mxu0 %v921
        %1305 = vmatprep.subr.bf16.mxu0 0
        %1306 = vmatpush1.bf16.msra.mxu0 %v922
        %1307 = vmatprep.mubr.bf16.mxu0 %v1212
        %1308 = vmatmul.mubr.bf16.gmra.mrb[0].mxu0 %v1211
        %v1309 = vpop.f32.mrb[0].mxu0
        %v1310 = vadd.f32 %v958, %v1309
        %v1311 = vpop.f32.mrb[0].mxu0
        %v1312 = vpop.f32.mrb[0].mxu0
        %v1313 = vadd.f32 %v963, %v1312
        %v1314 = vpop.f32.mrb[0].mxu0
        %1315 = vmatprep.mubr.bf16.mxu0 %v1214
        %1316 = vmatmul.mubr.bf16.gmra.mrb[0].mxu0 %v1213
        %v1317 = vpop.f32.mrb[0].mxu0
        %v1318 = vadd.f32 %v968, %v1317
        %v1319 = vpop.f32.mrb[0].mxu0
        %v1320 = vpop.f32.mrb[0].mxu0
        %v1321 = vadd.f32 %v973, %v1320
        %v1322 = vpop.f32.mrb[0].mxu0
        %1323 = vmatprep.mubr.bf16.mxu0 %v1216
        %1324 = vmatmul.mubr.bf16.gmra.mrb[0].mxu0 %v1215
        %v1325 = vpop.f32.mrb[0].mxu0
        %v1326 = vadd.f32 %v978, %v1325
        %v1327 = vpop.f32.mrb[0].mxu0
        %v1328 = vpop.f32.mrb[0].mxu0
        %v1329 = vadd.f32 %v983, %v1328
        %v1330 = vpop.f32.mrb[0].mxu0
        %1331 = vmatprep.mubr.bf16.mxu0 %v1218
        %1332 = vmatmul.mubr.bf16.gmra.mrb[0].mxu0 %v1217
        %v1333 = vpop.f32.mrb[0].mxu0
        %v1334 = vadd.f32 %v988, %v1333
        %v1335 = vpop.f32.mrb[0].mxu0
        %v1336 = vpop.f32.mrb[0].mxu0
        %v1337 = vadd.f32 %v993, %v1336
        %v1338 = vpop.f32.mrb[0].mxu0
        %1339 = vmatprep.mubr.bf16.mxu0 %v1220
        %1340 = vmatmul.mubr.bf16.gmra.mrb[0].mxu0 %v1219
        %v1341 = vpop.f32.mrb[0].mxu0
        %v1342 = vadd.f32 %v998, %v1341
        %v1343 = vpop.f32.mrb[0].mxu0
        %v1344 = vpop.f32.mrb[0].mxu0
        %v1345 = vadd.f32 %v1003, %v1344
        %v1346 = vpop.f32.mrb[0].mxu0
        %1347 = vmatprep.mubr.bf16.mxu0 %v1222
        %1348 = vmatmul.mubr.bf16.gmra.mrb[0].mxu0 %v1221
        %v1349 = vpop.f32.mrb[0].mxu0
        %v1350 = vadd.f32 %v1008, %v1349
        %v1351 = vpop.f32.mrb[0].mxu0
        %v1352 = vpop.f32.mrb[0].mxu0
        %v1353 = vadd.f32 %v1013, %v1352
        %v1354 = vpop.f32.mrb[0].mxu0
        %1355 = vmatprep.mubr.bf16.mxu0 %v1224
        %1356 = vmatmul.mubr.bf16.gmra.mrb[0].mxu0 %v1223
        %v1357 = vpop.f32.mrb[0].mxu0
        %v1358 = vadd.f32 %v1018, %v1357
        %v1359 = vpop.f32.mrb[0].mxu0
        %v1360 = vpop.f32.mrb[0].mxu0
        %v1361 = vadd.f32 %v1023, %v1360
        %v1362 = vpop.f32.mrb[0].mxu0
        %1363 = vmatprep.mubr.bf16.mxu0 %v1226
        %1364 = vmatmul.mubr.bf16.gmra.mrb[0].mxu0 %v1225
        %v1365 = vpop.f32.mrb[0].mxu0
        %v1366 = vadd.f32 %v1028, %v1365
        %v1367 = vpop.f32.mrb[0].mxu0
        %v1368 = vpop.f32.mrb[0].mxu0
        %v1369 = vadd.f32 %v1033, %v1368
        %v1370 = vpop.f32.mrb[0].mxu0
        %1371 = vmatprep.mubr.bf16.mxu0 %v1228
        %1372 = vmatmul.mubr.bf16.gmra.mrb[0].mxu0 %v1227
        %v1373 = vpop.f32.mrb[0].mxu0
        %v1374 = vadd.f32 %v1038, %v1373
        %v1375 = vpop.f32.mrb[0].mxu0
        %v1376 = vpop.f32.mrb[0].mxu0
        %v1377 = vadd.f32 %v1043, %v1376
        %v1378 = vpop.f32.mrb[0].mxu0
        %1379 = vmatprep.mubr.bf16.mxu0 %v1230
        %1380 = vmatmul.mubr.bf16.gmra.mrb[0].mxu0 %v1229
        %v1381 = vpop.f32.mrb[0].mxu0
        %v1382 = vadd.f32 %v1048, %v1381
        %v1383 = vpop.f32.mrb[0].mxu0
        %v1384 = vpop.f32.mrb[0].mxu0
        %v1385 = vadd.f32 %v1053, %v1384
        %v1386 = vpop.f32.mrb[0].mxu0
        %1387 = vmatprep.mubr.bf16.mxu0 %v1232
        %1388 = vmatmul.mubr.bf16.gmra.mrb[0].mxu0 %v1231
        %v1389 = vpop.f32.mrb[0].mxu0
        %v1390 = vadd.f32 %v1058, %v1389
        %v1391 = vpop.f32.mrb[0].mxu0
        %v1392 = vpop.f32.mrb[0].mxu0
        %v1393 = vadd.f32 %v1063, %v1392
        %v1394 = vpop.f32.mrb[0].mxu0
        %1395 = vmatprep.mubr.bf16.mxu0 %v1234
        %1396 = vmatmul.mubr.bf16.gmra.mrb[0].mxu0 %v1233
        %v1397 = vpop.f32.mrb[0].mxu0
        %v1398 = vadd.f32 %v1068, %v1397
        %v1399 = vpop.f32.mrb[0].mxu0
        %v1400 = vpop.f32.mrb[0].mxu0
        %v1401 = vadd.f32 %v1073, %v1400
        %v1402 = vpop.f32.mrb[0].mxu0
        %1403 = vmatprep.mubr.bf16.mxu0 %v1236
        %1404 = vmatmul.mubr.bf16.gmra.mrb[0].mxu0 %v1235
        %v1405 = vpop.f32.mrb[0].mxu0
        %v1406 = vadd.f32 %v1078, %v1405
        %v1407 = vpop.f32.mrb[0].mxu0
        %v1408 = vpop.f32.mrb[0].mxu0
        %v1409 = vadd.f32 %v1083, %v1408
        %v1410 = vpop.f32.mrb[0].mxu0
        %1411 = vmatprep.mubr.bf16.mxu0 %v1238
        %1412 = vmatmul.mubr.bf16.gmra.mrb[0].mxu0 %v1237
        %v1413 = vpop.f32.mrb[0].mxu0
        %v1414 = vadd.f32 %v1088, %v1413
        %v1415 = vpop.f32.mrb[0].mxu0
        %v1416 = vpop.f32.mrb[0].mxu0
        %v1417 = vadd.f32 %v1093, %v1416
        %v1418 = vpop.f32.mrb[0].mxu0
        %1419 = vmatprep.mubr.bf16.mxu0 %v1240
        %1420 = vmatmul.mubr.bf16.gmra.mrb[0].mxu0 %v1239
        %v1421 = vpop.f32.mrb[0].mxu0
        %v1422 = vadd.f32 %v1098, %v1421
        %v1423 = vpop.f32.mrb[0].mxu0
        %v1424 = vpop.f32.mrb[0].mxu0
        %v1425 = vadd.f32 %v1103, %v1424
        %v1426 = vpop.f32.mrb[0].mxu0
        %1427 = vmatprep.mubr.bf16.mxu0 %v1242
        %1428 = vmatmul.mubr.bf16.gmra.mrb[0].mxu0 %v1241
        %v1429 = vpop.f32.mrb[0].mxu0
        %v1430 = vadd.f32 %v1108, %v1429
        %v1431 = vpop.f32.mrb[0].mxu0
        %v1432 = vpop.f32.mrb[0].mxu0
        %v1433 = vadd.f32 %v1113, %v1432
        %v1434 = vpop.f32.mrb[0].mxu0
        %1435 = vdwg.mxu0
        %v1436 = vmax.f32 %v1310, 0.0
        %v1437 = vmax.f32 %v1313, 0.0
        %v1438 = vmax.f32 %v1318, 0.0
        %v1439 = vmax.f32 %v1321, 0.0
        %v1440 = vmax.f32 %v1326, 0.0
        %v1441 = vmax.f32 %v1329, 0.0
        %v1442 = vmax.f32 %v1334, 0.0
        %v1443 = vmax.f32 %v1337, 0.0
        %v1444 = vmax.f32 %v1342, 0.0
        %v1445 = vmax.f32 %v1345, 0.0
        %v1446 = vmax.f32 %v1350, 0.0
        %v1447 = vmax.f32 %v1353, 0.0
        %v1448 = vmax.f32 %v1358, 0.0
        %v1449 = vmax.f32 %v1361, 0.0
        %v1450 = vmax.f32 %v1366, 0.0
        %v1451 = vmax.f32 %v1369, 0.0
        %v1452 = vmax.f32 %v1374, 0.0
        %v1453 = vmax.f32 %v1377, 0.0
        %v1454 = vmax.f32 %v1382, 0.0
        %v1455 = vmax.f32 %v1385, 0.0
        %v1456 = vmax.f32 %v1390, 0.0
        %v1457 = vmax.f32 %v1393, 0.0
        %v1458 = vmax.f32 %v1398, 0.0
        %v1459 = vmax.f32 %v1401, 0.0
        %v1460 = vmax.f32 %v1406, 0.0
        %v1461 = vmax.f32 %v1409, 0.0
        %v1462 = vmax.f32 %v1414, 0.0
        %v1463 = vmax.f32 %v1417, 0.0
        %v1464 = vmax.f32 %v1422, 0.0
        %v1465 = vmax.f32 %v1425, 0.0
        %v1466 = vmax.f32 %v1430, 0.0
        %v1467 = vmax.f32 %v1433, 0.0
        %v1468 = vld [vmem:[%s5] sm:$0xff]
        %v1469 = vld [vmem:[%s5 + $0x8] sm:$0xff]
        %v1470 = vld [vmem:[%s5 + $0x10] sm:$0xff]
        %v1471 = vld [vmem:[%s5 + $0x18] sm:$0xff]
        %v1472 = vld [vmem:[%s5 + $0x20] sm:$0xff]
        %v1473 = vld [vmem:[%s5 + $0x28] sm:$0xff]
        %v1474 = vld [vmem:[%s5 + $0x30] sm:$0xff]
        %v1475 = vld [vmem:[%s5 + $0x38] sm:$0xff]
        %v1476 = vld [vmem:[%s5 + $0x40] sm:$0xff]
        %v1477 = vld [vmem:[%s5 + $0x48] sm:$0xff]
        %v1478 = vld [vmem:[%s5 + $0x50] sm:$0xff]
        %v1479 = vld [vmem:[%s5 + $0x58] sm:$0xff]
        %v1480 = vld [vmem:[%s5 + $0x60] sm:$0xff]
        %v1481 = vld [vmem:[%s5 + $0x68] sm:$0xff]
        %v1482 = vld [vmem:[%s5 + $0x70] sm:$0xff]
        %v1483 = vld [vmem:[%s5 + $0x78] sm:$0xff]
        %v1484 = vld [vmem:[%s5 + $0x80] sm:$0xff]
        %v1485 = vld [vmem:[%s5 + $0x88] sm:$0xff]
        %v1486 = vld [vmem:[%s5 + $0x90] sm:$0xff]
        %v1487 = vld [vmem:[%s5 + $0x98] sm:$0xff]
        %v1488 = vld [vmem:[%s5 + $0xa0] sm:$0xff]
        %v1489 = vld [vmem:[%s5 + $0xa8] sm:$0xff]
        %v1490 = vld [vmem:[%s5 + $0xb0] sm:$0xff]
        %v1491 = vld [vmem:[%s5 + $0xb8] sm:$0xff]
        %v1492 = vld [vmem:[%s5 + $0xc0] sm:$0xff]
        %v1493 = vld [vmem:[%s5 + $0xc8] sm:$0xff]
        %v1494 = vld [vmem:[%s5 + $0xd0] sm:$0xff]
        %v1495 = vld [vmem:[%s5 + $0xd8] sm:$0xff]
        %v1496 = vld [vmem:[%s5 + $0xe0] sm:$0xff]
        %v1497 = vld [vmem:[%s5 + $0xe8] sm:$0xff]
        %v1498 = vld [vmem:[%s5 + $0xf0] sm:$0xff]
        %v1499 = vld [vmem:[%s5 + $0xf8] sm:$0xff]
        %1501 = vset.pattern.permute.xlu0 0
        %1502 = vperm.xlu0 %1501, %v1468
        %v1503 = vpop.permute.xlu0 %1502
        %1506 = vset.pattern.permute.xlu0 0
        %1507 = vperm.xlu0 %1506, %v1469
        %v1508 = vpop.permute.xlu0 %1507
        %1511 = vset.pattern.permute.xlu0 0
        %1512 = vperm.xlu0 %1511, %v1470
        %v1513 = vpop.permute.xlu0 %1512
        %1516 = vset.pattern.permute.xlu0 0
        %1517 = vperm.xlu0 %1516, %v1471
        %v1518 = vpop.permute.xlu0 %1517
        %1521 = vset.pattern.permute.xlu0 0
        %1522 = vperm.xlu0 %1521, %v1472
        %v1523 = vpop.permute.xlu0 %1522
        %1526 = vset.pattern.permute.xlu0 0
        %1527 = vperm.xlu0 %1526, %v1473
        %v1528 = vpop.permute.xlu0 %1527
        %1531 = vset.pattern.permute.xlu0 0
        %1532 = vperm.xlu0 %1531, %v1474
        %v1533 = vpop.permute.xlu0 %1532
        %1536 = vset.pattern.permute.xlu0 0
        %1537 = vperm.xlu0 %1536, %v1475
        %v1538 = vpop.permute.xlu0 %1537
        %1541 = vset.pattern.permute.xlu0 0
        %1542 = vperm.xlu0 %1541, %v1476
        %v1543 = vpop.permute.xlu0 %1542
        %1546 = vset.pattern.permute.xlu0 0
        %1547 = vperm.xlu0 %1546, %v1477
        %v1548 = vpop.permute.xlu0 %1547
        %1551 = vset.pattern.permute.xlu0 0
        %1552 = vperm.xlu0 %1551, %v1478
        %v1553 = vpop.permute.xlu0 %1552
        %1556 = vset.pattern.permute.xlu0 0
        %1557 = vperm.xlu0 %1556, %v1479
        %v1558 = vpop.permute.xlu0 %1557
        %1561 = vset.pattern.permute.xlu0 0
        %1562 = vperm.xlu0 %1561, %v1480
        %v1563 = vpop.permute.xlu0 %1562
        %1566 = vset.pattern.permute.xlu0 0
        %1567 = vperm.xlu0 %1566, %v1481
        %v1568 = vpop.permute.xlu0 %1567
        %1571 = vset.pattern.permute.xlu0 0
        %1572 = vperm.xlu0 %1571, %v1482
        %v1573 = vpop.permute.xlu0 %1572
        %1576 = vset.pattern.permute.xlu0 0
        %1577 = vperm.xlu0 %1576, %v1483
        %v1578 = vpop.permute.xlu0 %1577
        %1581 = vset.pattern.permute.xlu0 0
        %1582 = vperm.xlu0 %1581, %v1484
        %v1583 = vpop.permute.xlu0 %1582
        %1586 = vset.pattern.permute.xlu0 0
        %1587 = vperm.xlu0 %1586, %v1485
        %v1588 = vpop.permute.xlu0 %1587
        %1591 = vset.pattern.permute.xlu0 0
        %1592 = vperm.xlu0 %1591, %v1486
        %v1593 = vpop.permute.xlu0 %1592
        %1596 = vset.pattern.permute.xlu0 0
        %1597 = vperm.xlu0 %1596, %v1487
        %v1598 = vpop.permute.xlu0 %1597
        %1601 = vset.pattern.permute.xlu0 0
        %1602 = vperm.xlu0 %1601, %v1488
        %v1603 = vpop.permute.xlu0 %1602
        %1606 = vset.pattern.permute.xlu0 0
        %1607 = vperm.xlu0 %1606, %v1489
        %v1608 = vpop.permute.xlu0 %1607
        %1611 = vset.pattern.permute.xlu0 0
        %1612 = vperm.xlu0 %1611, %v1490
        %v1613 = vpop.permute.xlu0 %1612
        %1616 = vset.pattern.permute.xlu0 0
        %1617 = vperm.xlu0 %1616, %v1491
        %v1618 = vpop.permute.xlu0 %1617
        %1621 = vset.pattern.permute.xlu0 0
        %1622 = vperm.xlu0 %1621, %v1492
        %v1623 = vpop.permute.xlu0 %1622
        %1626 = vset.pattern.permute.xlu0 0
        %1627 = vperm.xlu0 %1626, %v1493
        %v1628 = vpop.permute.xlu0 %1627
        %1631 = vset.pattern.permute.xlu0 0
        %1632 = vperm.xlu0 %1631, %v1494
        %v1633 = vpop.permute.xlu0 %1632
        %1636 = vset.pattern.permute.xlu0 0
        %1637 = vperm.xlu0 %1636, %v1495
        %v1638 = vpop.permute.xlu0 %1637
        %1641 = vset.pattern.permute.xlu0 0
        %1642 = vperm.xlu0 %1641, %v1496
        %v1643 = vpop.permute.xlu0 %1642
        %1646 = vset.pattern.permute.xlu0 0
        %1647 = vperm.xlu0 %1646, %v1497
        %v1648 = vpop.permute.xlu0 %1647
        %1651 = vset.pattern.permute.xlu0 0
        %1652 = vperm.xlu0 %1651, %v1498
        %v1653 = vpop.permute.xlu0 %1652
        %1656 = vset.pattern.permute.xlu0 0
        %1657 = vperm.xlu0 %1656, %v1499
        %v1658 = vpop.permute.xlu0 %1657
        %v1660 = vmul.f32 %v1436, %v1503
        %v1661 = vmul.f32 %v1437, %v1508
        %v1662 = vmul.f32 %v1438, %v1513
        %v1663 = vmul.f32 %v1439, %v1518
        %v1664 = vmul.f32 %v1440, %v1523
        %v1665 = vmul.f32 %v1441, %v1528
        %v1666 = vmul.f32 %v1442, %v1533
        %v1667 = vmul.f32 %v1443, %v1538
        %v1668 = vmul.f32 %v1444, %v1543
        %v1669 = vmul.f32 %v1445, %v1548
        %v1670 = vmul.f32 %v1446, %v1553
        %v1671 = vmul.f32 %v1447, %v1558
        %v1672 = vmul.f32 %v1448, %v1563
        %v1673 = vmul.f32 %v1449, %v1568
        %v1674 = vmul.f32 %v1450, %v1573
        %v1675 = vmul.f32 %v1451, %v1578
        %v1676 = vmul.f32 %v1452, %v1583
        %v1677 = vmul.f32 %v1453, %v1588
        %v1678 = vmul.f32 %v1454, %v1593
        %v1679 = vmul.f32 %v1455, %v1598
        %v1680 = vmul.f32 %v1456, %v1603
        %v1681 = vmul.f32 %v1457, %v1608
        %v1682 = vmul.f32 %v1458, %v1613
        %v1683 = vmul.f32 %v1459, %v1618
        %v1684 = vmul.f32 %v1460, %v1623
        %v1685 = vmul.f32 %v1461, %v1628
        %v1686 = vmul.f32 %v1462, %v1633
        %v1687 = vmul.f32 %v1463, %v1638
        %v1688 = vmul.f32 %v1464, %v1643
        %v1689 = vmul.f32 %v1465, %v1648
        %v1690 = vmul.f32 %v1466, %v1653
        %v1691 = vmul.f32 %v1467, %v1658
        %v1692 = vadd.f32 %v1660, %v1661
        %v1693 = vadd.f32 %v1692, %v1662
        %v1694 = vadd.f32 %v1693, %v1663
        %v1695 = vadd.f32 %v1694, %v1664
        %v1696 = vadd.f32 %v1695, %v1665
        %v1697 = vadd.f32 %v1696, %v1666
        %v1698 = vadd.f32 %v1697, %v1667
        %v1699 = vadd.f32 %v1698, %v1668
        %v1700 = vadd.f32 %v1699, %v1669
        %v1701 = vadd.f32 %v1700, %v1670
        %v1702 = vadd.f32 %v1701, %v1671
        %v1703 = vadd.f32 %v1702, %v1672
        %v1704 = vadd.f32 %v1703, %v1673
        %v1705 = vadd.f32 %v1704, %v1674
        %v1706 = vadd.f32 %v1705, %v1675
        %v1707 = vadd.f32 %v1706, %v1676
        %v1708 = vadd.f32 %v1707, %v1677
        %v1709 = vadd.f32 %v1708, %v1678
        %v1710 = vadd.f32 %v1709, %v1679
        %v1711 = vadd.f32 %v1710, %v1680
        %v1712 = vadd.f32 %v1711, %v1681
        %v1713 = vadd.f32 %v1712, %v1682
        %v1714 = vadd.f32 %v1713, %v1683
        %v1715 = vadd.f32 %v1714, %v1684
        %v1716 = vadd.f32 %v1715, %v1685
        %v1717 = vadd.f32 %v1716, %v1686
        %v1718 = vadd.f32 %v1717, %v1687
        %v1719 = vadd.f32 %v1718, %v1688
        %v1720 = vadd.f32 %v1719, %v1689
        %v1721 = vadd.f32 %v1720, %v1690
        %v1722 = vadd.f32 %v1721, %v1691
        %v1723 = vrot.slane %v1722, 4
        %v1724 = vadd.f32 %v1722, %v1723
        %v1725 = vrot.slane %v1724, 2
        %v1726 = vadd.f32 %v1724, %v1725
        %v1727 = vrot.slane %v1726, 1
        %v1728 = vadd.f32 %v1726, %v1727
        %v1729 = vld [vmem:[#allocation2] sm:$0x1]
        %1731 = vset.pattern.permute.xlu0 0
        %1732 = vperm.xlu0 %1731, %v1729
        %v1733 = vpop.permute.xlu0 %1732
        %v1735 = vlaneseq
        %v1736 = vshrl.u32 %v1735, 7
        %v1737 = vsub.s32 0, %v1736
        %v1738 = vrot.slane %v1733, %v1737
        %v1739 = vadd.f32 %v1728, %v1738
        %1740 = vst [vmem:[%s273] sm:$0x1] %v1739
        %s1741 = sand.u32 %s183, 1
        %s1742 = scalar_lea.sflag [#allocation4], %s1741
        %s1743 = sand.u32 %s183, 1
        %s1744 = scalar_lea.vmem [#allocation3], %s1743
        // Predicated region
        $region49: #{tpu_custom_call.1} parent=47 // pred_check
          %p1745 = pneg %p193
        $region50: #{tpu_custom_call.1} parent=47 // pred_check_branch
          %1747 = sbr.rel (%p1745) target = $region52
        $region51: #{tpu_custom_call.1} parent=47 // pred_region
          %s1749 = ssub.s32 16, 16
          %1750 = vsyncadd %s1742, %s1749
          %s1751 = smul.addr %s23, 16
          %s1752 = scalar_lea.hbm %s7, %s1751
          %s1754 = sshll.u32 %s1744, 4
          %s1755 = int_to_ptr.vmem [resolvable:$true] %s1754
          %1757 = dma.vmem_to_hbm [thread:$0]  %s1755, 16, %s1752, %s1742
        $region52: #{tpu_custom_call.1} parent=47 // pred_fallthru
          _
      $region48: #{tpu_custom_call.1} parent=5 // pred_fallthru
        _
      %p1758 = scmp.le.s32.totalorder 2, %s18
      // Predicated region
      $region53: #{tpu_custom_call.1} parent=5 // pred_check
        %p1759 = pneg %p1758
      $region54: #{tpu_custom_call.1} parent=5 // pred_check_branch
        %1761 = sbr.rel (%p1759) target = $region56
      $region55: #{tpu_custom_call.1} parent=5 // pred_region
        %s1762 = ssub.s32 %s18, 2
        // Predicated region
        $region57: #{tpu_custom_call.1} parent=55 // pred_check
          %p1763 = pneg %p199
        $region58: #{tpu_custom_call.1} parent=55 // pred_check_branch
          %1765 = sbr.rel (%p1763) target = $region60
        $region59: #{tpu_custom_call.1} parent=55 // pred_region
          %s1766 = sand.u32 %s184, 1
          %s1767 = scalar_lea.sflag [#allocation4], %s1766
          %s1768 = sand.u32 %s184, 1
          %s1769 = scalar_lea.vmem [#allocation3], %s1768
          %1770 = dma.done %s1767, 16
        $region60: #{tpu_custom_call.1} parent=55 // pred_fallthru
          _
      $region56: #{tpu_custom_call.1} parent=5 // pred_fallthru
        _
    $region6: #{tpu_custom_call.1} parent=1 // loop_footer
      %s22 = sadd.s32 1, %s18
    $region7: #{tpu_custom_call.1} parent=1 // loop_footer_branch
      %17 = sbr.rel target = $region3
    $region8: #{tpu_custom_call.1} parent=1 // loop_exit
      _
    %1771 = vsyncpa [#allocation4], 1
    %s1772 = scalar_lea.sflag [#allocation4], 1
    %1773 = vsyncpa %s1772, 1

</llo_original>
